<compile_context>
chip_gen: v7x
topology: tpu7x:2x2x1
jax: 0.10.0
libtpu: 0.0.40
codegen_flags: <defaults>
</compile_context>

<pallas_src>
import functools

import numpy as np
import jax
import jax.numpy as jnp
from jax import lax
from jax.experimental import pallas as pl
from jax.experimental.pallas import tpu as pltpu


# ----------------------------------------------------------------------------
# Stage 2: tiled per-cell argmax (domination check) on cell-sorted points.
# Grid = (j tiles, i tiles); i (candidate dominator) is the last / "arbitrary"
# axis so the per-j accumulator stays resident.
# ----------------------------------------------------------------------------
def _dominate_kernel(lo_ref, hi_ref,                       # scalar prefetch (SMEM)
                     flat_row_ref, h_row_ref,              # (1, TJ) candidates j
                     flat_col_ref, h_col_ref,              # (TI, 1) dominators i
                     keep_ref, acc_ref, *, tile_i, tile_j):
    j_t = pl.program_id(0)
    i_t = pl.program_id(1)
    chunks_per_j = tile_j // tile_i          # TI-chunks covered by one j tile

    @pl.when(i_t == 0)
    def _init():
        acc_ref[...] = jnp.zeros_like(acc_ref)

    # Cell-id ranges of the two tiles (points are pre-sorted by cell id, so a
    # tile's cells form a contiguous range).  If the ranges cannot share a
    # cell, the whole tile pair is skipped: only near-diagonal tiles do work.
    lo_i = lo_ref[i_t]
    hi_i = hi_ref[i_t]
    lo_j = lo_ref[j_t * chunks_per_j]
    hi_j = hi_ref[j_t * chunks_per_j + (chunks_per_j - 1)]
    overlap = jnp.logical_and(lo_i <= hi_j, hi_i >= lo_j)

    # Tile-position specialization of the index tie-break.
    i_start = i_t * tile_i
    j_start = j_t * tile_j
    before = (i_start + tile_i) <= j_start        # every i precedes every j
    after = i_start >= (j_start + tile_j)         # every i follows every j
    diag = jnp.logical_not(jnp.logical_or(before, after))

    ones = jnp.ones((1, tile_i), jnp.bfloat16)

    def accumulate(beats):
        # point j is dominated iff some same-cell i "beats" it.  Count the
        # dominators on the MXU (ones-vector matmul) instead of a sublane
        # reduce; counts are tiny integers, exact in f32.
        same_cell = flat_col_ref[...] == flat_row_ref[...]          # (TI, TJ)
        mask = jnp.logical_and(same_cell, beats).astype(jnp.bfloat16)
        # TODO(synk): on v5e (single vst slot) a VPU tree-max over sublane
        # chunks may beat the mask-store + matmul path; re-check the bundle.
        acc_ref[...] += jnp.dot(ones, mask, preferred_element_type=jnp.float32)

    @pl.when(jnp.logical_and(overlap, before))
    def _():   # earlier i wins any tie -> (h_i >= h_j)
        accumulate(h_col_ref[...] >= h_row_ref[...])

    @pl.when(jnp.logical_and(overlap, after))
    def _():   # later i never wins a tie -> strict (h_i > h_j)
        accumulate(h_col_ref[...] > h_row_ref[...])

    @pl.when(jnp.logical_and(overlap, diag))
    def _():   # only diagonal tiles need the explicit index compare
        i_idx = lax.broadcasted_iota(jnp.int32, (tile_i, 1), 0) + i_start
        j_idx = lax.broadcasted_iota(jnp.int32, (1, tile_j), 1) + j_start
        h_col = h_col_ref[...]
        h_row = h_row_ref[...]
        accumulate(jnp.logical_or(
            h_col > h_row,
            jnp.logical_and(h_col == h_row, i_idx < j_idx)))

    @pl.when(i_t == pl.num_programs(1) - 1)
    def _finalize():
        keep_ref[...] = (acc_ref[...] == 0.0).astype(jnp.int32)


# ----------------------------------------------------------------------------
# Tile / padding selection: pad to a tile multiple (not a power of two).
# ----------------------------------------------------------------------------
def _choose_tiles(n_real):
    """Return (n_pad, tile_i, tile_j)."""
    ti_max, tj_max = 512, 2048
    if n_real <= 1024:
        # single tile; (8,128) alignment via a 128 multiple
        n_pad = max(128, -(-n_real // 128) * 128)
        return n_pad, n_pad, n_pad
    n_pad = -(-n_real // ti_max) * ti_max            # multiple of TI = 512
    tile_j = ti_max
    for cand in (tj_max, tj_max // 2):               # prefer wide lane-dense TJ
        if n_pad % cand == 0 and n_pad // cand >= 2:  # keep >=2 j tiles (v7x 2 TCs)
            tile_j = cand
            break
    return n_pad, ti_max, tile_j


# ----------------------------------------------------------------------------
# One fused device dispatch: quantize -> sort by cell -> Pallas dominance scan
# -> keep mask / ordering / kept count.
# ----------------------------------------------------------------------------
@functools.partial(jax.jit,
                   static_argnames=("n_pad", "tile_i", "tile_j", "inv_half_res"))
def _pipeline(xyz, batch_indices, *, n_pad, tile_i, tile_j, inv_half_res):
    n_real = xyz.shape[0]
    pad = n_pad - n_real
    if pad:
        # Pad with copies of point 0: never changes min/max reductions and,
        # because ties resolve to the earlier point, never wins a cell.
        xyz_p = jnp.concatenate(
            [xyz, jnp.broadcast_to(xyz[0:1], (pad, 3))], axis=0)
        b_p = jnp.concatenate(
            [batch_indices, jnp.broadcast_to(batch_indices[0:1], (pad,))], axis=0)
    else:
        xyz_p, b_p = xyz, batch_indices

    x = xyz_p[:, 0].astype(jnp.float32)
    heights = xyz_p[:, 1].astype(jnp.float32)
    z = xyz_p[:, 2].astype(jnp.float32)
    b = b_p.astype(jnp.int32)

    # ---- Stage 1 (plain XLA): discrete indices + flattened cell index ------
    rows = jnp.round(z * inv_half_res).astype(jnp.int32)
    cols = jnp.round(x * inv_half_res).astype(jnp.int32)
    rows = rows - jnp.min(rows)
    cols = cols - jnp.min(cols)
    rmax = jnp.max(rows)
    cmax = jnp.max(cols)
    flat = b * (rmax * cmax) + rows * cmax + cols          # reference strides

    # ---- Sort by cell id (stable) so same-cell points are contiguous -------
    perm = jnp.argsort(flat, stable=True)
    flat_s = jnp.take(flat, perm)
    h_s = jnp.take(heights, perm)

    # Per-TI-chunk cell-id ranges for the tile-skip test (scalar prefetch).
    lo = flat_s[0::tile_i]
    hi = flat_s[tile_i - 1::tile_i]

    # ---- Stage 2: Pallas tiled domination check -----------------------------
    grid = (n_pad // tile_j, n_pad // tile_i)              # (j tiles, i tiles)
    row_spec = pl.BlockSpec((1, tile_j), lambda j, i, lo_r, hi_r: (0, j))
    col_spec = pl.BlockSpec((tile_i, 1), lambda j, i, lo_r, hi_r: (i, 0))

    keep = pl.pallas_call(
        functools.partial(_dominate_kernel, tile_i=tile_i, tile_j=tile_j),
        out_shape=jax.ShapeDtypeStruct((1, n_pad), jnp.int32),
        grid_spec=pltpu.PrefetchScalarGridSpec(
            num_scalar_prefetch=2,
            grid=grid,
            in_specs=[row_spec, row_spec, col_spec, col_spec],
            out_specs=row_spec,
            scratch_shapes=[pltpu.VMEM((1, tile_j), jnp.float32)]),
        compiler_params=pltpu.CompilerParams(
            dimension_semantics=("parallel", "arbitrary"),
            vmem_limit_bytes=32 * 1024 * 1024),     # safe on v5e/v6e/v7x
    )(lo, hi,
      flat_s.reshape(1, n_pad), h_s.reshape(1, n_pad),
      flat_s.reshape(n_pad, 1), h_s.reshape(n_pad, 1))

    keep_s = keep[0] > 0                                    # sorted order
    kept = jnp.logical_and(keep_s, perm < n_real)
    count = jnp.sum(kept.astype(jnp.int32))

    # Kept points first, in ascending sorted position == ascending cell index.
    order_s = jnp.argsort(jnp.where(kept, 0, 1).astype(jnp.int32), stable=True)
    order_full = jnp.take(perm, order_s).astype(jnp.int32)

    # Keep mask / flat indices in the original point order.
    keep_orig = jnp.zeros((n_pad,), jnp.bool_).at[perm].set(keep_s)
    return keep_orig[:n_real], flat[:n_real], order_full, count


# ----------------------------------------------------------------------------
# Wrapper
# ----------------------------------------------------------------------------
def keep_highest_semantic_pointcloud(xyz, batch_indices, semantics,
                                     map_resolution_meters):
    """Mirrors KeepHighestSemanticPointcloud.forward.

    Returns (xyz, batch_indices, semantics) of the kept points ordered by
    ascending flattened cell index (same order the PyTorch reference
    produces), plus the per-point keep mask and flattened indices.
    """
    n_real = int(xyz.shape[0])
    if n_real == 0:
        return xyz, batch_indices, semantics, None, None

    n_pad, tile_i, tile_j = _choose_tiles(n_real)
    inv_half_res = 2.0 / float(map_resolution_meters)

    keep_real, flat_real, order_full, count = _pipeline(
        xyz, batch_indices,
        n_pad=n_pad, tile_i=tile_i, tile_j=tile_j, inv_half_res=inv_half_res)

    # TODO(synk): output size is data dependent; this single host sync is
    # unavoidable (dynamic shapes are not expressible in XLA/Pallas).
    count = int(count)
    kept_order = order_full[:count]

    # Gathers stay eager (no jit wrapper) so a varying kept count does not
    # trigger per-count recompiles; they are three tiny dispatches.
    out_xyz = jnp.take(xyz, kept_order, axis=0)
    out_b = jnp.take(batch_indices, kept_order, axis=0)
    out_sem = jnp.take(semantics, kept_order, axis=0)
    return out_xyz, out_b, out_sem, keep_real, flat_real


if __name__ == "__main__":
    # Module has no learned parameters; the only "parameter" is the resolution.
    MAP_RESOLUTION_METERS = 0.5

    key = jax.random.PRNGKey(0)
    k1, k2, k3 = jax.random.split(key, 3)
    N = 200           # non-multiple of 128 to exercise padding
    BATCH = 2
    NUM_CLASSES = 4

    xyz = jax.random.uniform(k1, (N, 3), jnp.float32, minval=-4.0, maxval=4.0)
    batch_indices = jax.random.randint(k2, (N,), 0, BATCH, dtype=jnp.int32)
    semantics = jax.random.randint(k3, (N,), 0, NUM_CLASSES, dtype=jnp.int32)

    out_xyz, out_b, out_sem, keep_mask, flat_idx = keep_highest_semantic_pointcloud(
        xyz, batch_indices, semantics, MAP_RESOLUTION_METERS)
    jax.block_until_ready((out_xyz, out_b, out_sem, keep_mask, flat_idx))

    # Self-consistency check of the scatter_max/argmax hot path and output
    # ordering against numpy, using the kernel's own flattened indices.
    heights = np.asarray(xyz)[:, 1]
    flat_np = np.asarray(flat_idx)
    keep_np = np.asarray(keep_mask)
    ref_keep = np.zeros(N, dtype=bool)
    for cell in np.unique(flat_np):
        idxs = np.nonzero(flat_np == cell)[0]
        ref_keep[idxs[np.argmax(heights[idxs])]] = True   # first max -> lowest index
    assert np.array_equal(ref_keep, keep_np), "argmax selection mismatch"

    kept_idx = np.nonzero(ref_keep)[0]
    ref_order = kept_idx[np.argsort(flat_np[kept_idx], kind="stable")]
    np.testing.assert_array_equal(np.asarray(out_xyz), np.asarray(xyz)[ref_order])
    np.testing.assert_array_equal(np.asarray(out_b),
                                  np.asarray(batch_indices)[ref_order])
    np.testing.assert_array_equal(np.asarray(out_sem),
                                  np.asarray(semantics)[ref_order])
    assert out_xyz.shape == (int(ref_keep.sum()), 3)

    print("KERNEL_OK")
</pallas_src>

<mosaic_0001>
module attributes {stable_mosaic.version = 11 : i64} {
  func.func @_dominate_kernel(%arg0: i32, %arg1: i32, %arg2: memref<1xi32, #tpu.memory_space<smem>>, %arg3: memref<1xi32, #tpu.memory_space<smem>>, %arg4: memref<1x256xi32, #tpu.memory_space<vmem>>, %arg5: memref<1x256xf32, #tpu.memory_space<vmem>>, %arg6: memref<256x1xi32, #tpu.memory_space<vmem>>, %arg7: memref<256x1xf32, #tpu.memory_space<vmem>>, %arg8: memref<1x256xi32, #tpu.memory_space<vmem>>, %arg9: memref<1x256xf32, #tpu.memory_space<vmem>>) attributes {dimension_semantics = [#tpu.dimension_semantics<parallel>, #tpu.dimension_semantics<arbitrary>], iteration_bounds = array<i64: 1, 1>, scalar_prefetch = 2 : i64, scratch_operands = 1 : i64, tpu.core_type = #tpu.core_type<tc>, window_params = [{transform_indices = @transform_0, window_bounds = array<i64: 1, 256>}, {transform_indices = @transform_1, window_bounds = array<i64: 1, 256>}, {transform_indices = @transform_2, window_bounds = array<i64: 256, 1>}, {transform_indices = @transform_3, window_bounds = array<i64: 256, 1>}, {transform_indices = @transform_4, window_bounds = array<i64: 1, 256>}]} {
    %c0_i32 = arith.constant 0 : i32
    %0 = arith.cmpi eq, %arg1, %c0_i32 : i32
    %1 = arith.extui %0 : i1 to i32
    %c0_i32_0 = arith.constant 0 : i32
    %2 = arith.cmpi ne, %1, %c0_i32_0 : i32
    scf.if %2 {
      %cst_11 = arith.constant 0.000000e+00 : f32
      %38 = vector.broadcast %cst_11 : f32 to vector<1x256xf32>
      %c0 = arith.constant 0 : index
      %c0_12 = arith.constant 0 : index
      %39 = vector.load %arg9[%c0, %c0_12] : memref<1x256xf32, #tpu.memory_space<vmem>>, vector<1x256xf32>
      tpu.vector_store %arg9[%c0, %c0_12], %38 {strides = array<i32>} : memref<1x256xf32, #tpu.memory_space<vmem>>, vector<1x256xf32>,
    } else {
    }
    %3 = arith.index_cast %arg1 : i32 to index
    %4 = memref.load %arg2[%3] : memref<1xi32, #tpu.memory_space<smem>>
    %5 = arith.index_cast %arg1 : i32 to index
    %6 = memref.load %arg3[%5] : memref<1xi32, #tpu.memory_space<smem>>
    %c1_i32 = arith.constant 1 : i32
    %7 = arith.muli %arg0, %c1_i32 : i32
    %8 = arith.index_cast %7 : i32 to index
    %9 = memref.load %arg2[%8] : memref<1xi32, #tpu.memory_space<smem>>
    %c1_i32_1 = arith.constant 1 : i32
    %10 = arith.muli %arg0, %c1_i32_1 : i32
    %c0_i32_2 = arith.constant 0 : i32
    %11 = arith.addi %10, %c0_i32_2 : i32
    %12 = arith.index_cast %11 : i32 to index
    %13 = memref.load %arg3[%12] : memref<1xi32, #tpu.memory_space<smem>>
    %14 = arith.cmpi sle, %4, %13 : i32
    %15 = arith.cmpi sge, %6, %9 : i32
    %16 = arith.andi %14, %15 : i1
    %c256_i32 = arith.constant 256 : i32
    %17 = arith.muli %arg1, %c256_i32 : i32
    %c256_i32_3 = arith.constant 256 : i32
    %18 = arith.muli %arg0, %c256_i32_3 : i32
    %c256_i32_4 = arith.constant 256 : i32
    %19 = arith.addi %17, %c256_i32_4 : i32
    %20 = arith.cmpi sle, %19, %18 : i32
    %c256_i32_5 = arith.constant 256 : i32
    %21 = arith.addi %18, %c256_i32_5 : i32
    %22 = arith.cmpi sge, %17, %21 : i32
    %23 = arith.ori %20, %22 : i1
    %true = arith.constant true
    %24 = arith.xori %23, %true : i1
    %cst = arith.constant 1.000000e+00 : bf16
    %25 = vector.broadcast %cst : bf16 to vector<1x256xbf16>
    %26 = arith.andi %16, %20 : i1
    %27 = arith.extui %26 : i1 to i32
    %c0_i32_6 = arith.constant 0 : i32
    %28 = arith.cmpi ne, %27, %c0_i32_6 : i32
    scf.if %28 {
      %c0 = arith.constant 0 : index
      %c0_11 = arith.constant 0 : index
      %38 = vector.load %arg7[%c0, %c0_11] : memref<256x1xf32, #tpu.memory_space<vmem>>, vector<256x1xf32>
      %c0_12 = arith.constant 0 : index
      %c0_13 = arith.constant 0 : index
      %39 = vector.load %arg5[%c0_12, %c0_13] : memref<1x256xf32, #tpu.memory_space<vmem>>, vector<1x256xf32>
      %40 = vector.broadcast %38 : vector<256x1xf32> to vector<256x256xf32>
      %41 = vector.broadcast %39 : vector<1x256xf32> to vector<256x256xf32>
      %42 = arith.cmpf oge, %40, %41 : vector<256x256xf32>
      %c0_14 = arith.constant 0 : index
      %c0_15 = arith.constant 0 : index
      %43 = vector.load %arg6[%c0_14, %c0_15] : memref<256x1xi32, #tpu.memory_space<vmem>>, vector<256x1xi32>
      %c0_16 = arith.constant 0 : index
      %c0_17 = arith.constant 0 : index
      %44 = vector.load %arg4[%c0_16, %c0_17] : memref<1x256xi32, #tpu.memory_space<vmem>>, vector<1x256xi32>
      %45 = vector.broadcast %43 : vector<256x1xi32> to vector<256x256xi32>
      %46 = vector.broadcast %44 : vector<1x256xi32> to vector<256x256xi32>
      %47 = arith.cmpi eq, %45, %46 : vector<256x256xi32>
      %48 = arith.andi %47, %42 : vector<256x256xi1>
      %49 = arith.extui %48 : vector<256x256xi1> to vector<256x256xi32>
      %50 = arith.sitofp %49 : vector<256x256xi32> to vector<256x256xf32>
      %51 = arith.truncf %50 : vector<256x256xf32> to vector<256x256xbf16>
      %c0_18 = arith.constant 0 : index
      %c0_19 = arith.constant 0 : index
      %52 = vector.load %arg9[%c0_18, %c0_19] : memref<1x256xf32, #tpu.memory_space<vmem>>, vector<1x256xf32>
      %cst_20 = arith.constant dense<0.000000e+00> : vector<1x256xf32>
      %53 = tpu.matmul %25, %51, %cst_20 {dimension_numbers = #tpu.dot_dimension_numbers<[1], [0], [0], [1], [0, 0, 1, 1], [], []>} : vector<1x256xbf16>, vector<256x256xbf16>, vector<1x256xf32> -> vector<1x256xf32>
      %54 = arith.addf %52, %53 : vector<1x256xf32>
      %c0_21 = arith.constant 0 : index
      %c0_22 = arith.constant 0 : index
      %55 = vector.load %arg9[%c0_21, %c0_22] : memref<1x256xf32, #tpu.memory_space<vmem>>, vector<1x256xf32>
      tpu.vector_store %arg9[%c0_21, %c0_22], %54 {strides = array<i32>} : memref<1x256xf32, #tpu.memory_space<vmem>>, vector<1x256xf32>,
    } else {
    }
    %29 = arith.andi %16, %22 : i1
    %30 = arith.extui %29 : i1 to i32
    %c0_i32_7 = arith.constant 0 : i32
    %31 = arith.cmpi ne, %30, %c0_i32_7 : i32
    scf.if %31 {
      %c0 = arith.constant 0 : index
      %c0_11 = arith.constant 0 : index
      %38 = vector.load %arg7[%c0, %c0_11] : memref<256x1xf32, #tpu.memory_space<vmem>>, vector<256x1xf32>
      %c0_12 = arith.constant 0 : index
      %c0_13 = arith.constant 0 : index
      %39 = vector.load %arg5[%c0_12, %c0_13] : memref<1x256xf32, #tpu.memory_space<vmem>>, vector<1x256xf32>
      %40 = vector.broadcast %38 : vector<256x1xf32> to vector<256x256xf32>
      %41 = vector.broadcast %39 : vector<1x256xf32> to vector<256x256xf32>
      %42 = arith.cmpf ogt, %40, %41 : vector<256x256xf32>
      %c0_14 = arith.constant 0 : index
      %c0_15 = arith.constant 0 : index
      %43 = vector.load %arg6[%c0_14, %c0_15] : memref<256x1xi32, #tpu.memory_space<vmem>>, vector<256x1xi32>
      %c0_16 = arith.constant 0 : index
      %c0_17 = arith.constant 0 : index
      %44 = vector.load %arg4[%c0_16, %c0_17] : memref<1x256xi32, #tpu.memory_space<vmem>>, vector<1x256xi32>
      %45 = vector.broadcast %43 : vector<256x1xi32> to vector<256x256xi32>
      %46 = vector.broadcast %44 : vector<1x256xi32> to vector<256x256xi32>
      %47 = arith.cmpi eq, %45, %46 : vector<256x256xi32>
      %48 = arith.andi %47, %42 : vector<256x256xi1>
      %49 = arith.extui %48 : vector<256x256xi1> to vector<256x256xi32>
      %50 = arith.sitofp %49 : vector<256x256xi32> to vector<256x256xf32>
      %51 = arith.truncf %50 : vector<256x256xf32> to vector<256x256xbf16>
      %c0_18 = arith.constant 0 : index
      %c0_19 = arith.constant 0 : index
      %52 = vector.load %arg9[%c0_18, %c0_19] : memref<1x256xf32, #tpu.memory_space<vmem>>, vector<1x256xf32>
      %cst_20 = arith.constant dense<0.000000e+00> : vector<1x256xf32>
      %53 = tpu.matmul %25, %51, %cst_20 {dimension_numbers = #tpu.dot_dimension_numbers<[1], [0], [0], [1], [0, 0, 1, 1], [], []>} : vector<1x256xbf16>, vector<256x256xbf16>, vector<1x256xf32> -> vector<1x256xf32>
      %54 = arith.addf %52, %53 : vector<1x256xf32>
      %c0_21 = arith.constant 0 : index
      %c0_22 = arith.constant 0 : index
      %55 = vector.load %arg9[%c0_21, %c0_22] : memref<1x256xf32, #tpu.memory_space<vmem>>, vector<1x256xf32>
      tpu.vector_store %arg9[%c0_21, %c0_22], %54 {strides = array<i32>} : memref<1x256xf32, #tpu.memory_space<vmem>>, vector<1x256xf32>,
    } else {
    }
    %32 = arith.andi %16, %24 : i1
    %33 = arith.extui %32 : i1 to i32
    %c0_i32_8 = arith.constant 0 : i32
    %34 = arith.cmpi ne, %33, %c0_i32_8 : i32
    scf.if %34 {
      %38 = tpu.iota {dimensions = array<i32: 0>} : vector<256x1xi32>
      %39 = vector.broadcast %17 : i32 to vector<256x1xi32>
      %40 = arith.addi %38, %39 : vector<256x1xi32>
      %41 = tpu.iota {dimensions = array<i32: 1>} : vector<1x256xi32>
      %42 = vector.broadcast %18 : i32 to vector<1x256xi32>
      %43 = arith.addi %41, %42 : vector<1x256xi32>
      %c0 = arith.constant 0 : index
      %c0_11 = arith.constant 0 : index
      %44 = vector.load %arg7[%c0, %c0_11] : memref<256x1xf32, #tpu.memory_space<vmem>>, vector<256x1xf32>
      %c0_12 = arith.constant 0 : index
      %c0_13 = arith.constant 0 : index
      %45 = vector.load %arg5[%c0_12, %c0_13] : memref<1x256xf32, #tpu.memory_space<vmem>>, vector<1x256xf32>
      %46 = vector.broadcast %44 : vector<256x1xf32> to vector<256x256xf32>
      %47 = vector.broadcast %45 : vector<1x256xf32> to vector<256x256xf32>
      %48 = arith.cmpf ogt, %46, %47 : vector<256x256xf32>
      %49 = vector.broadcast %44 : vector<256x1xf32> to vector<256x256xf32>
      %50 = vector.broadcast %45 : vector<1x256xf32> to vector<256x256xf32>
      %51 = arith.cmpf oeq, %49, %50 : vector<256x256xf32>
      %52 = vector.broadcast %40 : vector<256x1xi32> to vector<256x256xi32>
      %53 = vector.broadcast %43 : vector<1x256xi32> to vector<256x256xi32>
      %54 = arith.cmpi slt, %52, %53 : vector<256x256xi32>
      %55 = arith.andi %51, %54 : vector<256x256xi1>
      %56 = arith.ori %48, %55 : vector<256x256xi1>
      %c0_14 = arith.constant 0 : index
      %c0_15 = arith.constant 0 : index
      %57 = vector.load %arg6[%c0_14, %c0_15] : memref<256x1xi32, #tpu.memory_space<vmem>>, vector<256x1xi32>
      %c0_16 = arith.constant 0 : index
      %c0_17 = arith.constant 0 : index
      %58 = vector.load %arg4[%c0_16, %c0_17] : memref<1x256xi32, #tpu.memory_space<vmem>>, vector<1x256xi32>
      %59 = vector.broadcast %57 : vector<256x1xi32> to vector<256x256xi32>
      %60 = vector.broadcast %58 : vector<1x256xi32> to vector<256x256xi32>
      %61 = arith.cmpi eq, %59, %60 : vector<256x256xi32>
      %62 = arith.andi %61, %56 : vector<256x256xi1>
      %63 = arith.extui %62 : vector<256x256xi1> to vector<256x256xi32>
      %64 = arith.sitofp %63 : vector<256x256xi32> to vector<256x256xf32>
      %65 = arith.truncf %64 : vector<256x256xf32> to vector<256x256xbf16>
      %c0_18 = arith.constant 0 : index
      %c0_19 = arith.constant 0 : index
      %66 = vector.load %arg9[%c0_18, %c0_19] : memref<1x256xf32, #tpu.memory_space<vmem>>, vector<1x256xf32>
      %cst_20 = arith.constant dense<0.000000e+00> : vector<1x256xf32>
      %67 = tpu.matmul %25, %65, %cst_20 {dimension_numbers = #tpu.dot_dimension_numbers<[1], [0], [0], [1], [0, 0, 1, 1], [], []>} : vector<1x256xbf16>, vector<256x256xbf16>, vector<1x256xf32> -> vector<1x256xf32>
      %68 = arith.addf %66, %67 : vector<1x256xf32>
      %c0_21 = arith.constant 0 : index
      %c0_22 = arith.constant 0 : index
      %69 = vector.load %arg9[%c0_21, %c0_22] : memref<1x256xf32, #tpu.memory_space<vmem>>, vector<1x256xf32>
      tpu.vector_store %arg9[%c0_21, %c0_22], %68 {strides = array<i32>} : memref<1x256xf32, #tpu.memory_space<vmem>>, vector<1x256xf32>,
    } else {
    }
    %c0_i32_9 = arith.constant 0 : i32
    %35 = arith.cmpi eq, %arg1, %c0_i32_9 : i32
    %36 = arith.extui %35 : i1 to i32
    %c0_i32_10 = arith.constant 0 : i32
    %37 = arith.cmpi ne, %36, %c0_i32_10 : i32
    scf.if %37 {
      %c0 = arith.constant 0 : index
      %c0_11 = arith.constant 0 : index
      %38 = vector.load %arg9[%c0, %c0_11] : memref<1x256xf32, #tpu.memory_space<vmem>>, vector<1x256xf32>
      %cst_12 = arith.constant 0.000000e+00 : f32
      %39 = vector.broadcast %cst_12 : f32 to vector<1x256xf32>
      %40 = arith.cmpf oeq, %38, %39 : vector<1x256xf32>
      %41 = arith.extui %40 : vector<1x256xi1> to vector<1x256xi32>
      %c0_13 = arith.constant 0 : index
      %c0_14 = arith.constant 0 : index
      %42 = vector.load %arg8[%c0_13, %c0_14] : memref<1x256xi32, #tpu.memory_space<vmem>>, vector<1x256xi32>
      tpu.vector_store %arg8[%c0_13, %c0_14], %41 {strides = array<i32>} : memref<1x256xi32, #tpu.memory_space<vmem>>, vector<1x256xi32>,
    } else {
    }
    return
  }
  func.func @transform_0(%arg0: i32, %arg1: i32, %arg2: memref<1xi32, #tpu.memory_space<smem>>, %arg3: memref<1xi32, #tpu.memory_space<smem>>) -> (i32, i32) {
    %c0_i32 = arith.constant 0 : i32
    %c0_i32_0 = arith.constant 0 : i32
    return %c0_i32, %arg0 : i32, i32
  }
  func.func @transform_1(%arg0: i32, %arg1: i32, %arg2: memref<1xi32, #tpu.memory_space<smem>>, %arg3: memref<1xi32, #tpu.memory_space<smem>>) -> (i32, i32) {
    %c0_i32 = arith.constant 0 : i32
    %c0_i32_0 = arith.constant 0 : i32
    return %c0_i32, %arg0 : i32, i32
  }
  func.func @transform_2(%arg0: i32, %arg1: i32, %arg2: memref<1xi32, #tpu.memory_space<smem>>, %arg3: memref<1xi32, #tpu.memory_space<smem>>) -> (i32, i32) {
    %c0_i32 = arith.constant 0 : i32
    %c0_i32_0 = arith.constant 0 : i32
    return %arg1, %c0_i32 : i32, i32
  }
  func.func @transform_3(%arg0: i32, %arg1: i32, %arg2: memref<1xi32, #tpu.memory_space<smem>>, %arg3: memref<1xi32, #tpu.memory_space<smem>>) -> (i32, i32) {
    %c0_i32 = arith.constant 0 : i32
    %c0_i32_0 = arith.constant 0 : i32
    return %arg1, %c0_i32 : i32, i32
  }
  func.func @transform_4(%arg0: i32, %arg1: i32, %arg2: memref<1xi32, #tpu.memory_space<smem>>, %arg3: memref<1xi32, #tpu.memory_space<smem>>) -> (i32, i32) {
    %c0_i32 = arith.constant 0 : i32
    %c0_i32_0 = arith.constant 0 : i32
    return %c0_i32, %arg0 : i32, i32
  }
}

</mosaic_0001>

<llo_original>
// kernel: _pipeline.1
$region0: #{_pipeline.1}
  #allocation0 [shape = 'u32[]', space=smem, size = 0x4, offset = 0x4, fixed_abs, tag = 'smem constant byte address 0x4 - core index']
  #allocation1 [shape = 'u32[144,128]{1,0:T(1,128)}', space=vmem, size = 0x12000, scoped, tag = 'internal scratch']
  #allocation2 [shape = 'f32[1,256]{1,0:T(1,128)}', space=vmem, size = 0x400, scoped, tag = 'scratch operand']
  #allocation3 [shape = 's32[1]{0}', space=sflag, size = 0x4, scoped, tag = 'scoped memory for _pipeline.1']
  #allocation4 [shape = 's32[1]{0:T(128)S(6)}', space=smem, size = 0x200, scoped, tag = 'prefetched SMEM operand 0']
  #allocation5 [shape = 's32[1]{0:T(128)S(6)}', space=smem, size = 0x200, scoped, tag = 'prefetched SMEM operand 1']
  %s0 = inlined_call_operand.<no memory space> [shape: s32[1], index: 0, kind: input, shape index: {}]
  %s1 = inlined_call_operand.<no memory space> [shape: s32[1], index: 1, kind: input, shape index: {}]
  %s2 = inlined_call_operand.vmem [shape: s32[1,256], index: 2, kind: input, shape index: {}]
  %s3 = inlined_call_operand.vmem [shape: f32[1,256], index: 3, kind: input, shape index: {}]
  %s4 = inlined_call_operand.vmem [shape: s32[256,1], index: 4, kind: input, shape index: {}]
  %s5 = inlined_call_operand.vmem [shape: f32[256,1], index: 5, kind: input, shape index: {}]
  %s6 = inlined_call_operand.vmem [shape: s32[1,256], index: 6, kind: output, shape index: {}]
  %s7 = sld [smem:[#allocation0]]
  $region46: #{_pipeline.1} parent=0
    _
  %s9 = ssub.s32 1, %s7
  %s10 = scalar_select 0, %s9, %s7
  %11 = sst [smem:[#allocation4]] %s0
  %12 = sst [smem:[#allocation5]] %s1
  // Predicated region
  $region2: #{_pipeline.1} parent=0 // pred_check
    _
  $region3: #{_pipeline.1} parent=0 // pred_check_branch
    %14 = sbr.rel (0) target = $region5
  $region4: #{_pipeline.1} parent=0 // pred_region
    _
  $region5: #{_pipeline.1} parent=0 // pred_fallthru
    _
  // Predicated region
  $region6: #{_pipeline.1} parent=0 // pred_check
    _
  $region7: #{_pipeline.1} parent=0 // pred_check_branch
    %16 = sbr.rel (0) target = $region9
  $region8: #{_pipeline.1} parent=0 // pred_region
    _
  $region9: #{_pipeline.1} parent=0 // pred_fallthru
    _
  // Predicated region
  $region10: #{_pipeline.1} parent=0 // pred_check
    _
  $region11: #{_pipeline.1} parent=0 // pred_check_branch
    %18 = sbr.rel (0) target = $region13
  $region12: #{_pipeline.1} parent=0 // pred_region
    _
  $region13: #{_pipeline.1} parent=0 // pred_fallthru
    _
  // Predicated region
  $region14: #{_pipeline.1} parent=0 // pred_check
    _
  $region15: #{_pipeline.1} parent=0 // pred_check_branch
    %20 = sbr.rel (0) target = $region17
  $region16: #{_pipeline.1} parent=0 // pred_region
    _
  $region17: #{_pipeline.1} parent=0 // pred_fallthru
    _
  %p22 = scmp.eq.s32.totalorder 0, 0
  // Predicated region
  $region18: #{_pipeline.1} parent=0 // pred_check
    %p23 = pneg %p22
  $region19: #{_pipeline.1} parent=0 // pred_check_branch
    %25 = sbr.rel (%p23) target = $region21
  $region20: #{_pipeline.1} parent=0 // pred_region
    %v26 = vlaneseq
    %vm27 = vcmp.ge.s32.totalorder %v26, 0
    %vm28 = vcmp.lt.s32.totalorder %v26, 256
    %vm29 = vmand %vm27, %vm28
    %30 = vst.msk [vmem:[#allocation2] sm:$0x3] %vm29, 0.0
  $region21: #{_pipeline.1} parent=0 // pred_fallthru
    _
  %s31 = sld [smem:[#allocation4]]
  %s32 = sld [smem:[#allocation5]]
  %s33 = sld [smem:[#allocation4]]
  %s34 = sld [smem:[#allocation5]]
  %p35 = scmp.le.s32.totalorder %s31, %s34
  %p36 = scmp.ge.s32.totalorder %s32, %s33
  %p37 = pnand %p35, %p36
  %p38 = pneg %p37
  %s39 = smul.u32 0, 256
  %s40 = smul.u32 0, 256
  %s41 = sadd.s32 %s39, 256
  %p42 = scmp.le.s32.totalorder %s41, %s40
  %s43 = sadd.s32 %s40, 256
  %p44 = scmp.ge.s32.totalorder %s39, %s43
  %p45 = por %p42, %p44
  %p46 = pneg %p45
  %p47 = pnand %p38, %p42
  %p48 = pneg %p47
  // Predicated region
  $region22: #{_pipeline.1} parent=0 // pred_check
    _
  $region23: #{_pipeline.1} parent=0 // pred_check_branch
    %50 = sbr.rel (%p47) target = $region25
  $region24: #{_pipeline.1} parent=0 // pred_region
    %v51 = vld [vmem:[%s5] sm:$0xff]
    %v52 = vld [vmem:[%s5 + $0x8] sm:$0xff]
    %v53 = vld [vmem:[%s5 + $0x10] sm:$0xff]
    %v54 = vld [vmem:[%s5 + $0x18] sm:$0xff]
    %v55 = vld [vmem:[%s5 + $0x20] sm:$0xff]
    %v56 = vld [vmem:[%s5 + $0x28] sm:$0xff]
    %v57 = vld [vmem:[%s5 + $0x30] sm:$0xff]
    %v58 = vld [vmem:[%s5 + $0x38] sm:$0xff]
    %v59 = vld [vmem:[%s5 + $0x40] sm:$0xff]
    %v60 = vld [vmem:[%s5 + $0x48] sm:$0xff]
    %v61 = vld [vmem:[%s5 + $0x50] sm:$0xff]
    %v62 = vld [vmem:[%s5 + $0x58] sm:$0xff]
    %v63 = vld [vmem:[%s5 + $0x60] sm:$0xff]
    %v64 = vld [vmem:[%s5 + $0x68] sm:$0xff]
    %v65 = vld [vmem:[%s5 + $0x70] sm:$0xff]
    %v66 = vld [vmem:[%s5 + $0x78] sm:$0xff]
    %v67 = vld [vmem:[%s5 + $0x80] sm:$0xff]
    %v68 = vld [vmem:[%s5 + $0x88] sm:$0xff]
    %v69 = vld [vmem:[%s5 + $0x90] sm:$0xff]
    %v70 = vld [vmem:[%s5 + $0x98] sm:$0xff]
    %v71 = vld [vmem:[%s5 + $0xa0] sm:$0xff]
    %v72 = vld [vmem:[%s5 + $0xa8] sm:$0xff]
    %v73 = vld [vmem:[%s5 + $0xb0] sm:$0xff]
    %v74 = vld [vmem:[%s5 + $0xb8] sm:$0xff]
    %v75 = vld [vmem:[%s5 + $0xc0] sm:$0xff]
    %v76 = vld [vmem:[%s5 + $0xc8] sm:$0xff]
    %v77 = vld [vmem:[%s5 + $0xd0] sm:$0xff]
    %v78 = vld [vmem:[%s5 + $0xd8] sm:$0xff]
    %v79 = vld [vmem:[%s5 + $0xe0] sm:$0xff]
    %v80 = vld [vmem:[%s5 + $0xe8] sm:$0xff]
    %v81 = vld [vmem:[%s5 + $0xf0] sm:$0xff]
    %v82 = vld [vmem:[%s5 + $0xf8] sm:$0xff]
    %v83 = vld [vmem:[%s3] sm:$0x3]
    %85 = vset.pattern.permute.xlu0 0
    %86 = vperm.xlu0 %85, %v51
    %v87 = vpop.permute.xlu0 %86
    %90 = vset.pattern.permute.xlu0 0
    %91 = vperm.xlu0 %90, %v52
    %v92 = vpop.permute.xlu0 %91
    %95 = vset.pattern.permute.xlu0 0
    %96 = vperm.xlu0 %95, %v53
    %v97 = vpop.permute.xlu0 %96
    %100 = vset.pattern.permute.xlu0 0
    %101 = vperm.xlu0 %100, %v54
    %v102 = vpop.permute.xlu0 %101
    %105 = vset.pattern.permute.xlu0 0
    %106 = vperm.xlu0 %105, %v55
    %v107 = vpop.permute.xlu0 %106
    %110 = vset.pattern.permute.xlu0 0
    %111 = vperm.xlu0 %110, %v56
    %v112 = vpop.permute.xlu0 %111
    %115 = vset.pattern.permute.xlu0 0
    %116 = vperm.xlu0 %115, %v57
    %v117 = vpop.permute.xlu0 %116
    %120 = vset.pattern.permute.xlu0 0
    %121 = vperm.xlu0 %120, %v58
    %v122 = vpop.permute.xlu0 %121
    %125 = vset.pattern.permute.xlu0 0
    %126 = vperm.xlu0 %125, %v59
    %v127 = vpop.permute.xlu0 %126
    %130 = vset.pattern.permute.xlu0 0
    %131 = vperm.xlu0 %130, %v60
    %v132 = vpop.permute.xlu0 %131
    %135 = vset.pattern.permute.xlu0 0
    %136 = vperm.xlu0 %135, %v61
    %v137 = vpop.permute.xlu0 %136
    %140 = vset.pattern.permute.xlu0 0
    %141 = vperm.xlu0 %140, %v62
    %v142 = vpop.permute.xlu0 %141
    %145 = vset.pattern.permute.xlu0 0
    %146 = vperm.xlu0 %145, %v63
    %v147 = vpop.permute.xlu0 %146
    %150 = vset.pattern.permute.xlu0 0
    %151 = vperm.xlu0 %150, %v64
    %v152 = vpop.permute.xlu0 %151
    %155 = vset.pattern.permute.xlu0 0
    %156 = vperm.xlu0 %155, %v65
    %v157 = vpop.permute.xlu0 %156
    %160 = vset.pattern.permute.xlu0 0
    %161 = vperm.xlu0 %160, %v66
    %v162 = vpop.permute.xlu0 %161
    %165 = vset.pattern.permute.xlu0 0
    %166 = vperm.xlu0 %165, %v67
    %v167 = vpop.permute.xlu0 %166
    %170 = vset.pattern.permute.xlu0 0
    %171 = vperm.xlu0 %170, %v68
    %v172 = vpop.permute.xlu0 %171
    %175 = vset.pattern.permute.xlu0 0
    %176 = vperm.xlu0 %175, %v69
    %v177 = vpop.permute.xlu0 %176
    %180 = vset.pattern.permute.xlu0 0
    %181 = vperm.xlu0 %180, %v70
    %v182 = vpop.permute.xlu0 %181
    %185 = vset.pattern.permute.xlu0 0
    %186 = vperm.xlu0 %185, %v71
    %v187 = vpop.permute.xlu0 %186
    %190 = vset.pattern.permute.xlu0 0
    %191 = vperm.xlu0 %190, %v72
    %v192 = vpop.permute.xlu0 %191
    %195 = vset.pattern.permute.xlu0 0
    %196 = vperm.xlu0 %195, %v73
    %v197 = vpop.permute.xlu0 %196
    %200 = vset.pattern.permute.xlu0 0
    %201 = vperm.xlu0 %200, %v74
    %v202 = vpop.permute.xlu0 %201
    %205 = vset.pattern.permute.xlu0 0
    %206 = vperm.xlu0 %205, %v75
    %v207 = vpop.permute.xlu0 %206
    %210 = vset.pattern.permute.xlu0 0
    %211 = vperm.xlu0 %210, %v76
    %v212 = vpop.permute.xlu0 %211
    %215 = vset.pattern.permute.xlu0 0
    %216 = vperm.xlu0 %215, %v77
    %v217 = vpop.permute.xlu0 %216
    %220 = vset.pattern.permute.xlu0 0
    %221 = vperm.xlu0 %220, %v78
    %v222 = vpop.permute.xlu0 %221
    %225 = vset.pattern.permute.xlu0 0
    %226 = vperm.xlu0 %225, %v79
    %v227 = vpop.permute.xlu0 %226
    %230 = vset.pattern.permute.xlu0 0
    %231 = vperm.xlu0 %230, %v80
    %v232 = vpop.permute.xlu0 %231
    %235 = vset.pattern.permute.xlu0 0
    %236 = vperm.xlu0 %235, %v81
    %v237 = vpop.permute.xlu0 %236
    %240 = vset.pattern.permute.xlu0 0
    %241 = vperm.xlu0 %240, %v82
    %v242 = vpop.permute.xlu0 %241
    %v245 = vlaneseq
    %v246 = vshrl.u32 %v245, 7
    %v247 = vsub.s32 0, %v246
    %v248 = vrot.slane %v83, %v247
    %v249 = vlaneseq
    %v250 = vshrl.u32 %v249, 7
    %v251 = vsub.s32 1, %v250
    %v252 = vrot.slane %v83, %v251
    %vm255 = vcmp.ge.f32.partialorder %v87, %v248
    %vm256 = vcmp.ge.f32.partialorder %v87, %v252
    %vm257 = vcmp.ge.f32.partialorder %v92, %v248
    %vm258 = vcmp.ge.f32.partialorder %v92, %v252
    %vm259 = vcmp.ge.f32.partialorder %v97, %v248
    %vm260 = vcmp.ge.f32.partialorder %v97, %v252
    %vm261 = vcmp.ge.f32.partialorder %v102, %v248
    %vm262 = vcmp.ge.f32.partialorder %v102, %v252
    %vm263 = vcmp.ge.f32.partialorder %v107, %v248
    %vm264 = vcmp.ge.f32.partialorder %v107, %v252
    %vm265 = vcmp.ge.f32.partialorder %v112, %v248
    %vm266 = vcmp.ge.f32.partialorder %v112, %v252
    %vm267 = vcmp.ge.f32.partialorder %v117, %v248
    %vm268 = vcmp.ge.f32.partialorder %v117, %v252
    %vm269 = vcmp.ge.f32.partialorder %v122, %v248
    %vm270 = vcmp.ge.f32.partialorder %v122, %v252
    %vm271 = vcmp.ge.f32.partialorder %v127, %v248
    %vm272 = vcmp.ge.f32.partialorder %v127, %v252
    %vm273 = vcmp.ge.f32.partialorder %v132, %v248
    %vm274 = vcmp.ge.f32.partialorder %v132, %v252
    %vm275 = vcmp.ge.f32.partialorder %v137, %v248
    %vm276 = vcmp.ge.f32.partialorder %v137, %v252
    %vm277 = vcmp.ge.f32.partialorder %v142, %v248
    %vm278 = vcmp.ge.f32.partialorder %v142, %v252
    %vm279 = vcmp.ge.f32.partialorder %v147, %v248
    %vm280 = vcmp.ge.f32.partialorder %v147, %v252
    %vm281 = vcmp.ge.f32.partialorder %v152, %v248
    %vm282 = vcmp.ge.f32.partialorder %v152, %v252
    %vm283 = vcmp.ge.f32.partialorder %v157, %v248
    %vm284 = vcmp.ge.f32.partialorder %v157, %v252
    %vm285 = vcmp.ge.f32.partialorder %v162, %v248
    %vm286 = vcmp.ge.f32.partialorder %v162, %v252
    %vm287 = vcmp.ge.f32.partialorder %v167, %v248
    %vm288 = vcmp.ge.f32.partialorder %v167, %v252
    %vm289 = vcmp.ge.f32.partialorder %v172, %v248
    %vm290 = vcmp.ge.f32.partialorder %v172, %v252
    %vm291 = vcmp.ge.f32.partialorder %v177, %v248
    %vm292 = vcmp.ge.f32.partialorder %v177, %v252
    %vm293 = vcmp.ge.f32.partialorder %v182, %v248
    %vm294 = vcmp.ge.f32.partialorder %v182, %v252
    %vm295 = vcmp.ge.f32.partialorder %v187, %v248
    %vm296 = vcmp.ge.f32.partialorder %v187, %v252
    %vm297 = vcmp.ge.f32.partialorder %v192, %v248
    %vm298 = vcmp.ge.f32.partialorder %v192, %v252
    %vm299 = vcmp.ge.f32.partialorder %v197, %v248
    %vm300 = vcmp.ge.f32.partialorder %v197, %v252
    %vm301 = vcmp.ge.f32.partialorder %v202, %v248
    %vm302 = vcmp.ge.f32.partialorder %v202, %v252
    %vm303 = vcmp.ge.f32.partialorder %v207, %v248
    %vm304 = vcmp.ge.f32.partialorder %v207, %v252
    %vm305 = vcmp.ge.f32.partialorder %v212, %v248
    %vm306 = vcmp.ge.f32.partialorder %v212, %v252
    %vm307 = vcmp.ge.f32.partialorder %v217, %v248
    %vm308 = vcmp.ge.f32.partialorder %v217, %v252
    %vm309 = vcmp.ge.f32.partialorder %v222, %v248
    %vm310 = vcmp.ge.f32.partialorder %v222, %v252
    %vm311 = vcmp.ge.f32.partialorder %v227, %v248
    %vm312 = vcmp.ge.f32.partialorder %v227, %v252
    %vm313 = vcmp.ge.f32.partialorder %v232, %v248
    %vm314 = vcmp.ge.f32.partialorder %v232, %v252
    %vm315 = vcmp.ge.f32.partialorder %v237, %v248
    %vm316 = vcmp.ge.f32.partialorder %v237, %v252
    %vm317 = vcmp.ge.f32.partialorder %v242, %v248
    %vm318 = vcmp.ge.f32.partialorder %v242, %v252
    %v319 = vld [vmem:[%s4] sm:$0xff]
    %v320 = vld [vmem:[%s4 + $0x8] sm:$0xff]
    %v321 = vld [vmem:[%s4 + $0x10] sm:$0xff]
    %v322 = vld [vmem:[%s4 + $0x18] sm:$0xff]
    %v323 = vld [vmem:[%s4 + $0x20] sm:$0xff]
    %v324 = vld [vmem:[%s4 + $0x28] sm:$0xff]
    %v325 = vld [vmem:[%s4 + $0x30] sm:$0xff]
    %v326 = vld [vmem:[%s4 + $0x38] sm:$0xff]
    %v327 = vld [vmem:[%s4 + $0x40] sm:$0xff]
    %v328 = vld [vmem:[%s4 + $0x48] sm:$0xff]
    %v329 = vld [vmem:[%s4 + $0x50] sm:$0xff]
    %v330 = vld [vmem:[%s4 + $0x58] sm:$0xff]
    %v331 = vld [vmem:[%s4 + $0x60] sm:$0xff]
    %v332 = vld [vmem:[%s4 + $0x68] sm:$0xff]
    %v333 = vld [vmem:[%s4 + $0x70] sm:$0xff]
    %v334 = vld [vmem:[%s4 + $0x78] sm:$0xff]
    %v335 = vld [vmem:[%s4 + $0x80] sm:$0xff]
    %v336 = vld [vmem:[%s4 + $0x88] sm:$0xff]
    %v337 = vld [vmem:[%s4 + $0x90] sm:$0xff]
    %v338 = vld [vmem:[%s4 + $0x98] sm:$0xff]
    %v339 = vld [vmem:[%s4 + $0xa0] sm:$0xff]
    %v340 = vld [vmem:[%s4 + $0xa8] sm:$0xff]
    %v341 = vld [vmem:[%s4 + $0xb0] sm:$0xff]
    %v342 = vld [vmem:[%s4 + $0xb8] sm:$0xff]
    %v343 = vld [vmem:[%s4 + $0xc0] sm:$0xff]
    %v344 = vld [vmem:[%s4 + $0xc8] sm:$0xff]
    %v345 = vld [vmem:[%s4 + $0xd0] sm:$0xff]
    %v346 = vld [vmem:[%s4 + $0xd8] sm:$0xff]
    %v347 = vld [vmem:[%s4 + $0xe0] sm:$0xff]
    %v348 = vld [vmem:[%s4 + $0xe8] sm:$0xff]
    %v349 = vld [vmem:[%s4 + $0xf0] sm:$0xff]
    %v350 = vld [vmem:[%s4 + $0xf8] sm:$0xff]
    %v351 = vld [vmem:[%s2] sm:$0x3]
    %352 = vset.pattern.permute.xlu0 0
    %353 = vperm.xlu0 %352, %v319
    %v354 = vpop.permute.xlu0 %353
    %355 = vset.pattern.permute.xlu0 0
    %356 = vperm.xlu0 %355, %v320
    %v357 = vpop.permute.xlu0 %356
    %358 = vset.pattern.permute.xlu0 0
    %359 = vperm.xlu0 %358, %v321
    %v360 = vpop.permute.xlu0 %359
    %361 = vset.pattern.permute.xlu0 0
    %362 = vperm.xlu0 %361, %v322
    %v363 = vpop.permute.xlu0 %362
    %364 = vset.pattern.permute.xlu0 0
    %365 = vperm.xlu0 %364, %v323
    %v366 = vpop.permute.xlu0 %365
    %367 = vset.pattern.permute.xlu0 0
    %368 = vperm.xlu0 %367, %v324
    %v369 = vpop.permute.xlu0 %368
    %370 = vset.pattern.permute.xlu0 0
    %371 = vperm.xlu0 %370, %v325
    %v372 = vpop.permute.xlu0 %371
    %373 = vset.pattern.permute.xlu0 0
    %374 = vperm.xlu0 %373, %v326
    %v375 = vpop.permute.xlu0 %374
    %376 = vset.pattern.permute.xlu0 0
    %377 = vperm.xlu0 %376, %v327
    %v378 = vpop.permute.xlu0 %377
    %379 = vset.pattern.permute.xlu0 0
    %380 = vperm.xlu0 %379, %v328
    %v381 = vpop.permute.xlu0 %380
    %382 = vset.pattern.permute.xlu0 0
    %383 = vperm.xlu0 %382, %v329
    %v384 = vpop.permute.xlu0 %383
    %385 = vset.pattern.permute.xlu0 0
    %386 = vperm.xlu0 %385, %v330
    %v387 = vpop.permute.xlu0 %386
    %388 = vset.pattern.permute.xlu0 0
    %389 = vperm.xlu0 %388, %v331
    %v390 = vpop.permute.xlu0 %389
    %391 = vset.pattern.permute.xlu0 0
    %392 = vperm.xlu0 %391, %v332
    %v393 = vpop.permute.xlu0 %392
    %394 = vset.pattern.permute.xlu0 0
    %395 = vperm.xlu0 %394, %v333
    %v396 = vpop.permute.xlu0 %395
    %397 = vset.pattern.permute.xlu0 0
    %398 = vperm.xlu0 %397, %v334
    %v399 = vpop.permute.xlu0 %398
    %400 = vset.pattern.permute.xlu0 0
    %401 = vperm.xlu0 %400, %v335
    %v402 = vpop.permute.xlu0 %401
    %403 = vset.pattern.permute.xlu0 0
    %404 = vperm.xlu0 %403, %v336
    %v405 = vpop.permute.xlu0 %404
    %406 = vset.pattern.permute.xlu0 0
    %407 = vperm.xlu0 %406, %v337
    %v408 = vpop.permute.xlu0 %407
    %409 = vset.pattern.permute.xlu0 0
    %410 = vperm.xlu0 %409, %v338
    %v411 = vpop.permute.xlu0 %410
    %412 = vset.pattern.permute.xlu0 0
    %413 = vperm.xlu0 %412, %v339
    %v414 = vpop.permute.xlu0 %413
    %415 = vset.pattern.permute.xlu0 0
    %416 = vperm.xlu0 %415, %v340
    %v417 = vpop.permute.xlu0 %416
    %418 = vset.pattern.permute.xlu0 0
    %419 = vperm.xlu0 %418, %v341
    %v420 = vpop.permute.xlu0 %419
    %421 = vset.pattern.permute.xlu0 0
    %422 = vperm.xlu0 %421, %v342
    %v423 = vpop.permute.xlu0 %422
    %424 = vset.pattern.permute.xlu0 0
    %425 = vperm.xlu0 %424, %v343
    %v426 = vpop.permute.xlu0 %425
    %427 = vset.pattern.permute.xlu0 0
    %428 = vperm.xlu0 %427, %v344
    %v429 = vpop.permute.xlu0 %428
    %430 = vset.pattern.permute.xlu0 0
    %431 = vperm.xlu0 %430, %v345
    %v432 = vpop.permute.xlu0 %431
    %433 = vset.pattern.permute.xlu0 0
    %434 = vperm.xlu0 %433, %v346
    %v435 = vpop.permute.xlu0 %434
    %436 = vset.pattern.permute.xlu0 0
    %437 = vperm.xlu0 %436, %v347
    %v438 = vpop.permute.xlu0 %437
    %439 = vset.pattern.permute.xlu0 0
    %440 = vperm.xlu0 %439, %v348
    %v441 = vpop.permute.xlu0 %440
    %442 = vset.pattern.permute.xlu0 0
    %443 = vperm.xlu0 %442, %v349
    %v444 = vpop.permute.xlu0 %443
    %445 = vset.pattern.permute.xlu0 0
    %446 = vperm.xlu0 %445, %v350
    %v447 = vpop.permute.xlu0 %446
    %v448 = vlaneseq
    %v449 = vshrl.u32 %v448, 7
    %v450 = vsub.s32 0, %v449
    %v451 = vrot.slane %v351, %v450
    %v452 = vlaneseq
    %v453 = vshrl.u32 %v452, 7
    %v454 = vsub.s32 1, %v453
    %v455 = vrot.slane %v351, %v454
    %vm456 = vcmp.eq.s32.totalorder %v354, %v451
    %vm457 = vcmp.eq.s32.totalorder %v354, %v455
    %vm458 = vcmp.eq.s32.totalorder %v357, %v451
    %vm459 = vcmp.eq.s32.totalorder %v357, %v455
    %vm460 = vcmp.eq.s32.totalorder %v360, %v451
    %vm461 = vcmp.eq.s32.totalorder %v360, %v455
    %vm462 = vcmp.eq.s32.totalorder %v363, %v451
    %vm463 = vcmp.eq.s32.totalorder %v363, %v455
    %vm464 = vcmp.eq.s32.totalorder %v366, %v451
    %vm465 = vcmp.eq.s32.totalorder %v366, %v455
    %vm466 = vcmp.eq.s32.totalorder %v369, %v451
    %vm467 = vcmp.eq.s32.totalorder %v369, %v455
    %vm468 = vcmp.eq.s32.totalorder %v372, %v451
    %vm469 = vcmp.eq.s32.totalorder %v372, %v455
    %vm470 = vcmp.eq.s32.totalorder %v375, %v451
    %vm471 = vcmp.eq.s32.totalorder %v375, %v455
    %vm472 = vcmp.eq.s32.totalorder %v378, %v451
    %vm473 = vcmp.eq.s32.totalorder %v378, %v455
    %vm474 = vcmp.eq.s32.totalorder %v381, %v451
    %vm475 = vcmp.eq.s32.totalorder %v381, %v455
    %vm476 = vcmp.eq.s32.totalorder %v384, %v451
    %vm477 = vcmp.eq.s32.totalorder %v384, %v455
    %vm478 = vcmp.eq.s32.totalorder %v387, %v451
    %vm479 = vcmp.eq.s32.totalorder %v387, %v455
    %vm480 = vcmp.eq.s32.totalorder %v390, %v451
    %vm481 = vcmp.eq.s32.totalorder %v390, %v455
    %vm482 = vcmp.eq.s32.totalorder %v393, %v451
    %vm483 = vcmp.eq.s32.totalorder %v393, %v455
    %vm484 = vcmp.eq.s32.totalorder %v396, %v451
    %vm485 = vcmp.eq.s32.totalorder %v396, %v455
    %vm486 = vcmp.eq.s32.totalorder %v399, %v451
    %vm487 = vcmp.eq.s32.totalorder %v399, %v455
    %vm488 = vcmp.eq.s32.totalorder %v402, %v451
    %vm489 = vcmp.eq.s32.totalorder %v402, %v455
    %vm490 = vcmp.eq.s32.totalorder %v405, %v451
    %vm491 = vcmp.eq.s32.totalorder %v405, %v455
    %vm492 = vcmp.eq.s32.totalorder %v408, %v451
    %vm493 = vcmp.eq.s32.totalorder %v408, %v455
    %vm494 = vcmp.eq.s32.totalorder %v411, %v451
    %vm495 = vcmp.eq.s32.totalorder %v411, %v455
    %vm496 = vcmp.eq.s32.totalorder %v414, %v451
    %vm497 = vcmp.eq.s32.totalorder %v414, %v455
    %vm498 = vcmp.eq.s32.totalorder %v417, %v451
    %vm499 = vcmp.eq.s32.totalorder %v417, %v455
    %vm500 = vcmp.eq.s32.totalorder %v420, %v451
    %vm501 = vcmp.eq.s32.totalorder %v420, %v455
    %vm502 = vcmp.eq.s32.totalorder %v423, %v451
    %vm503 = vcmp.eq.s32.totalorder %v423, %v455
    %vm504 = vcmp.eq.s32.totalorder %v426, %v451
    %vm505 = vcmp.eq.s32.totalorder %v426, %v455
    %vm506 = vcmp.eq.s32.totalorder %v429, %v451
    %vm507 = vcmp.eq.s32.totalorder %v429, %v455
    %vm508 = vcmp.eq.s32.totalorder %v432, %v451
    %vm509 = vcmp.eq.s32.totalorder %v432, %v455
    %vm510 = vcmp.eq.s32.totalorder %v435, %v451
    %vm511 = vcmp.eq.s32.totalorder %v435, %v455
    %vm512 = vcmp.eq.s32.totalorder %v438, %v451
    %vm513 = vcmp.eq.s32.totalorder %v438, %v455
    %vm514 = vcmp.eq.s32.totalorder %v441, %v451
    %vm515 = vcmp.eq.s32.totalorder %v441, %v455
    %vm516 = vcmp.eq.s32.totalorder %v444, %v451
    %vm517 = vcmp.eq.s32.totalorder %v444, %v455
    %vm518 = vcmp.eq.s32.totalorder %v447, %v451
    %vm519 = vcmp.eq.s32.totalorder %v447, %v455
    %vm520 = vmand %vm456, %vm255
    %vm521 = vmand %vm457, %vm256
    %vm522 = vmand %vm458, %vm257
    %vm523 = vmand %vm459, %vm258
    %vm524 = vmand %vm460, %vm259
    %vm525 = vmand %vm461, %vm260
    %vm526 = vmand %vm462, %vm261
    %vm527 = vmand %vm463, %vm262
    %vm528 = vmand %vm464, %vm263
    %vm529 = vmand %vm465, %vm264
    %vm530 = vmand %vm466, %vm265
    %vm531 = vmand %vm467, %vm266
    %vm532 = vmand %vm468, %vm267
    %vm533 = vmand %vm469, %vm268
    %vm534 = vmand %vm470, %vm269
    %vm535 = vmand %vm471, %vm270
    %vm536 = vmand %vm472, %vm271
    %vm537 = vmand %vm473, %vm272
    %vm538 = vmand %vm474, %vm273
    %vm539 = vmand %vm475, %vm274
    %vm540 = vmand %vm476, %vm275
    %vm541 = vmand %vm477, %vm276
    %vm542 = vmand %vm478, %vm277
    %vm543 = vmand %vm479, %vm278
    %vm544 = vmand %vm480, %vm279
    %vm545 = vmand %vm481, %vm280
    %vm546 = vmand %vm482, %vm281
    %vm547 = vmand %vm483, %vm282
    %vm548 = vmand %vm484, %vm283
    %vm549 = vmand %vm485, %vm284
    %vm550 = vmand %vm486, %vm285
    %vm551 = vmand %vm487, %vm286
    %vm552 = vmand %vm488, %vm287
    %vm553 = vmand %vm489, %vm288
    %vm554 = vmand %vm490, %vm289
    %vm555 = vmand %vm491, %vm290
    %vm556 = vmand %vm492, %vm291
    %vm557 = vmand %vm493, %vm292
    %vm558 = vmand %vm494, %vm293
    %vm559 = vmand %vm495, %vm294
    %vm560 = vmand %vm496, %vm295
    %vm561 = vmand %vm497, %vm296
    %vm562 = vmand %vm498, %vm297
    %vm563 = vmand %vm499, %vm298
    %vm564 = vmand %vm500, %vm299
    %vm565 = vmand %vm501, %vm300
    %vm566 = vmand %vm502, %vm301
    %vm567 = vmand %vm503, %vm302
    %vm568 = vmand %vm504, %vm303
    %vm569 = vmand %vm505, %vm304
    %vm570 = vmand %vm506, %vm305
    %vm571 = vmand %vm507, %vm306
    %vm572 = vmand %vm508, %vm307
    %vm573 = vmand %vm509, %vm308
    %vm574 = vmand %vm510, %vm309
    %vm575 = vmand %vm511, %vm310
    %vm576 = vmand %vm512, %vm311
    %vm577 = vmand %vm513, %vm312
    %vm578 = vmand %vm514, %vm313
    %vm579 = vmand %vm515, %vm314
    %vm580 = vmand %vm516, %vm315
    %vm581 = vmand %vm517, %vm316
    %vm582 = vmand %vm518, %vm317
    %vm583 = vmand %vm519, %vm318
    %v584 = vsel %vm520, 1, 0
    %v585 = vsel %vm521, 1, 0
    %v586 = vsel %vm522, 1, 0
    %v587 = vsel %vm523, 1, 0
    %v588 = vsel %vm524, 1, 0
    %v589 = vsel %vm525, 1, 0
    %v590 = vsel %vm526, 1, 0
    %v591 = vsel %vm527, 1, 0
    %v592 = vsel %vm528, 1, 0
    %v593 = vsel %vm529, 1, 0
    %v594 = vsel %vm530, 1, 0
    %v595 = vsel %vm531, 1, 0
    %v596 = vsel %vm532, 1, 0
    %v597 = vsel %vm533, 1, 0
    %v598 = vsel %vm534, 1, 0
    %v599 = vsel %vm535, 1, 0
    %v600 = vsel %vm536, 1, 0
    %v601 = vsel %vm537, 1, 0
    %v602 = vsel %vm538, 1, 0
    %v603 = vsel %vm539, 1, 0
    %v604 = vsel %vm540, 1, 0
    %v605 = vsel %vm541, 1, 0
    %v606 = vsel %vm542, 1, 0
    %v607 = vsel %vm543, 1, 0
    %v608 = vsel %vm544, 1, 0
    %v609 = vsel %vm545, 1, 0
    %v610 = vsel %vm546, 1, 0
    %v611 = vsel %vm547, 1, 0
    %v612 = vsel %vm548, 1, 0
    %v613 = vsel %vm549, 1, 0
    %v614 = vsel %vm550, 1, 0
    %v615 = vsel %vm551, 1, 0
    %v616 = vsel %vm552, 1, 0
    %v617 = vsel %vm553, 1, 0
    %v618 = vsel %vm554, 1, 0
    %v619 = vsel %vm555, 1, 0
    %v620 = vsel %vm556, 1, 0
    %v621 = vsel %vm557, 1, 0
    %v622 = vsel %vm558, 1, 0
    %v623 = vsel %vm559, 1, 0
    %v624 = vsel %vm560, 1, 0
    %v625 = vsel %vm561, 1, 0
    %v626 = vsel %vm562, 1, 0
    %v627 = vsel %vm563, 1, 0
    %v628 = vsel %vm564, 1, 0
    %v629 = vsel %vm565, 1, 0
    %v630 = vsel %vm566, 1, 0
    %v631 = vsel %vm567, 1, 0
    %v632 = vsel %vm568, 1, 0
    %v633 = vsel %vm569, 1, 0
    %v634 = vsel %vm570, 1, 0
    %v635 = vsel %vm571, 1, 0
    %v636 = vsel %vm572, 1, 0
    %v637 = vsel %vm573, 1, 0
    %v638 = vsel %vm574, 1, 0
    %v639 = vsel %vm575, 1, 0
    %v640 = vsel %vm576, 1, 0
    %v641 = vsel %vm577, 1, 0
    %v642 = vsel %vm578, 1, 0
    %v643 = vsel %vm579, 1, 0
    %v644 = vsel %vm580, 1, 0
    %v645 = vsel %vm581, 1, 0
    %v646 = vsel %vm582, 1, 0
    %v647 = vsel %vm583, 1, 0
    %v648 = vcvt.s32.f32 %v584
    %v649 = vcvt.s32.f32 %v585
    %v650 = vcvt.s32.f32 %v586
    %v651 = vcvt.s32.f32 %v587
    %v652 = vcvt.s32.f32 %v588
    %v653 = vcvt.s32.f32 %v589
    %v654 = vcvt.s32.f32 %v590
    %v655 = vcvt.s32.f32 %v591
    %v656 = vcvt.s32.f32 %v592
    %v657 = vcvt.s32.f32 %v593
    %v658 = vcvt.s32.f32 %v594
    %v659 = vcvt.s32.f32 %v595
    %v660 = vcvt.s32.f32 %v596
    %v661 = vcvt.s32.f32 %v597
    %v662 = vcvt.s32.f32 %v598
    %v663 = vcvt.s32.f32 %v599
    %v664 = vcvt.s32.f32 %v600
    %v665 = vcvt.s32.f32 %v601
    %v666 = vcvt.s32.f32 %v602
    %v667 = vcvt.s32.f32 %v603
    %v668 = vcvt.s32.f32 %v604
    %v669 = vcvt.s32.f32 %v605
    %v670 = vcvt.s32.f32 %v606
    %v671 = vcvt.s32.f32 %v607
    %v672 = vcvt.s32.f32 %v608
    %v673 = vcvt.s32.f32 %v609
    %v674 = vcvt.s32.f32 %v610
    %v675 = vcvt.s32.f32 %v611
    %v676 = vcvt.s32.f32 %v612
    %v677 = vcvt.s32.f32 %v613
    %v678 = vcvt.s32.f32 %v614
    %v679 = vcvt.s32.f32 %v615
    %v680 = vcvt.s32.f32 %v616
    %v681 = vcvt.s32.f32 %v617
    %v682 = vcvt.s32.f32 %v618
    %v683 = vcvt.s32.f32 %v619
    %v684 = vcvt.s32.f32 %v620
    %v685 = vcvt.s32.f32 %v621
    %v686 = vcvt.s32.f32 %v622
    %v687 = vcvt.s32.f32 %v623
    %v688 = vcvt.s32.f32 %v624
    %v689 = vcvt.s32.f32 %v625
    %v690 = vcvt.s32.f32 %v626
    %v691 = vcvt.s32.f32 %v627
    %v692 = vcvt.s32.f32 %v628
    %v693 = vcvt.s32.f32 %v629
    %v694 = vcvt.s32.f32 %v630
    %v695 = vcvt.s32.f32 %v631
    %v696 = vcvt.s32.f32 %v632
    %v697 = vcvt.s32.f32 %v633
    %v698 = vcvt.s32.f32 %v634
    %v699 = vcvt.s32.f32 %v635
    %v700 = vcvt.s32.f32 %v636
    %v701 = vcvt.s32.f32 %v637
    %v702 = vcvt.s32.f32 %v638
    %v703 = vcvt.s32.f32 %v639
    %v704 = vcvt.s32.f32 %v640
    %v705 = vcvt.s32.f32 %v641
    %v706 = vcvt.s32.f32 %v642
    %v707 = vcvt.s32.f32 %v643
    %v708 = vcvt.s32.f32 %v644
    %v709 = vcvt.s32.f32 %v645
    %v710 = vcvt.s32.f32 %v646
    %v711 = vcvt.s32.f32 %v647
    %v712 = vpack.c.bf16 %v650, %v648
    %v713 = vpack.c.bf16 %v651, %v649
    %v714 = vpack.c.bf16 %v654, %v652
    %v715 = vpack.c.bf16 %v655, %v653
    %v716 = vpack.c.bf16 %v658, %v656
    %v717 = vpack.c.bf16 %v659, %v657
    %v718 = vpack.c.bf16 %v662, %v660
    %v719 = vpack.c.bf16 %v663, %v661
    %v720 = vpack.c.bf16 %v666, %v664
    %v721 = vpack.c.bf16 %v667, %v665
    %v722 = vpack.c.bf16 %v670, %v668
    %v723 = vpack.c.bf16 %v671, %v669
    %v724 = vpack.c.bf16 %v674, %v672
    %v725 = vpack.c.bf16 %v675, %v673
    %v726 = vpack.c.bf16 %v678, %v676
    %v727 = vpack.c.bf16 %v679, %v677
    %v728 = vpack.c.bf16 %v682, %v680
    %v729 = vpack.c.bf16 %v683, %v681
    %v730 = vpack.c.bf16 %v686, %v684
    %v731 = vpack.c.bf16 %v687, %v685
    %v732 = vpack.c.bf16 %v690, %v688
    %v733 = vpack.c.bf16 %v691, %v689
    %v734 = vpack.c.bf16 %v694, %v692
    %v735 = vpack.c.bf16 %v695, %v693
    %v736 = vpack.c.bf16 %v698, %v696
    %v737 = vpack.c.bf16 %v699, %v697
    %v738 = vpack.c.bf16 %v702, %v700
    %v739 = vpack.c.bf16 %v703, %v701
    %v740 = vpack.c.bf16 %v706, %v704
    %v741 = vpack.c.bf16 %v707, %v705
    %v742 = vpack.c.bf16 %v710, %v708
    %v743 = vpack.c.bf16 %v711, %v709
    %v744 = vld [vmem:[#allocation2] sm:$0x3]
    %745 = vmatprep.subr.bf16.mxu0 %v713
    %746 = vmatpush1.bf16.msra.mxu0 %v712
    %747 = vmatprep.subr.bf16.mxu0 %v715
    %748 = vmatpush1.bf16.msra.mxu0 %v714
    %749 = vmatprep.subr.bf16.mxu0 %v717
    %750 = vmatpush1.bf16.msra.mxu0 %v716
    %751 = vmatprep.subr.bf16.mxu0 %v719
    %752 = vmatpush1.bf16.msra.mxu0 %v718
    %753 = vmatprep.subr.bf16.mxu0 %v721
    %754 = vmatpush1.bf16.msra.mxu0 %v720
    %755 = vmatprep.subr.bf16.mxu0 %v723
    %756 = vmatpush1.bf16.msra.mxu0 %v722
    %757 = vmatprep.subr.bf16.mxu0 %v725
    %758 = vmatpush1.bf16.msra.mxu0 %v724
    %759 = vmatprep.subr.bf16.mxu0 %v727
    %760 = vmatpush1.bf16.msra.mxu0 %v726
    %761 = vmatprep.subr.bf16.mxu0 %v729
    %762 = vmatpush1.bf16.msra.mxu0 %v728
    %763 = vmatprep.subr.bf16.mxu0 %v731
    %764 = vmatpush1.bf16.msra.mxu0 %v730
    %765 = vmatprep.subr.bf16.mxu0 %v733
    %766 = vmatpush1.bf16.msra.mxu0 %v732
    %767 = vmatprep.subr.bf16.mxu0 %v735
    %768 = vmatpush1.bf16.msra.mxu0 %v734
    %769 = vmatprep.subr.bf16.mxu0 %v737
    %770 = vmatpush1.bf16.msra.mxu0 %v736
    %771 = vmatprep.subr.bf16.mxu0 %v739
    %772 = vmatpush1.bf16.msra.mxu0 %v738
    %773 = vmatprep.subr.bf16.mxu0 %v741
    %774 = vmatpush1.bf16.msra.mxu0 %v740
    %775 = vmatprep.subr.bf16.mxu0 %v743
    %776 = vmatpush1.bf16.msra.mxu0 %v742
    %777 = vmatprep.mubr.bf16.mxu0 1065369472
    %778 = vmatmul.mubr.bf16.gmra.mrb[0].mxu0 1065369472
    %v779 = vpop.f32.mrb[0].mxu0
    %v780 = vadd.f32 0.0, %v779
    %v781 = vpop.f32.mrb[0].mxu0
    %v782 = vadd.f32 0.0, %v781
    %v783 = vpop.f32.mrb[0].mxu0
    %v784 = vpop.f32.mrb[0].mxu0
    %785 = vdwg.mxu0
    %v788 = vcombine.low %v780, %v782
    %v790 = vunpack.c.l.s4 1966171168
    %v791 = vunpack.c.0.s8 %v790
    %v792 = vlaneseq
    %v793 = vshrl.u32 %v792, 7
    %v794 = vsub.s32 %v791, %v793
    %v795 = vrot.slane %v788, %v794
    %v797 = vunpack.c.l.s4 1966171168
    %v798 = vunpack.c.0.s8 %v797
    %v799 = vlaneseq
    %v800 = vshrl.u32 %v799, 7
    %v801 = vsub.s32 %v798, %v800
    %v802 = vrot.slane %v795, %v801
    %v804 = vadd.f32 %v744, %v802
    %v805 = vlaneseq
    %vm806 = vcmp.ge.s32.totalorder %v805, 0
    %vm807 = vcmp.lt.s32.totalorder %v805, 256
    %vm808 = vmand %vm806, %vm807
    %809 = vst.msk [vmem:[#allocation2] sm:$0x3] %vm808, %v804
  $region25: #{_pipeline.1} parent=0 // pred_fallthru
    _
  %p810 = pnand %p38, %p44
  %p811 = pneg %p810
  // Predicated region
  $region26: #{_pipeline.1} parent=0 // pred_check
    _
  $region27: #{_pipeline.1} parent=0 // pred_check_branch
    %813 = sbr.rel (%p810) target = $region29
  $region28: #{_pipeline.1} parent=0 // pred_region
    %v814 = vld [vmem:[%s5] sm:$0xff]
    %v815 = vld [vmem:[%s5 + $0x8] sm:$0xff]
    %v816 = vld [vmem:[%s5 + $0x10] sm:$0xff]
    %v817 = vld [vmem:[%s5 + $0x18] sm:$0xff]
    %v818 = vld [vmem:[%s5 + $0x20] sm:$0xff]
    %v819 = vld [vmem:[%s5 + $0x28] sm:$0xff]
    %v820 = vld [vmem:[%s5 + $0x30] sm:$0xff]
    %v821 = vld [vmem:[%s5 + $0x38] sm:$0xff]
    %v822 = vld [vmem:[%s5 + $0x40] sm:$0xff]
    %v823 = vld [vmem:[%s5 + $0x48] sm:$0xff]
    %v824 = vld [vmem:[%s5 + $0x50] sm:$0xff]
    %v825 = vld [vmem:[%s5 + $0x58] sm:$0xff]
    %v826 = vld [vmem:[%s5 + $0x60] sm:$0xff]
    %v827 = vld [vmem:[%s5 + $0x68] sm:$0xff]
    %v828 = vld [vmem:[%s5 + $0x70] sm:$0xff]
    %v829 = vld [vmem:[%s5 + $0x78] sm:$0xff]
    %v830 = vld [vmem:[%s5 + $0x80] sm:$0xff]
    %v831 = vld [vmem:[%s5 + $0x88] sm:$0xff]
    %v832 = vld [vmem:[%s5 + $0x90] sm:$0xff]
    %v833 = vld [vmem:[%s5 + $0x98] sm:$0xff]
    %v834 = vld [vmem:[%s5 + $0xa0] sm:$0xff]
    %v835 = vld [vmem:[%s5 + $0xa8] sm:$0xff]
    %v836 = vld [vmem:[%s5 + $0xb0] sm:$0xff]
    %v837 = vld [vmem:[%s5 + $0xb8] sm:$0xff]
    %v838 = vld [vmem:[%s5 + $0xc0] sm:$0xff]
    %v839 = vld [vmem:[%s5 + $0xc8] sm:$0xff]
    %v840 = vld [vmem:[%s5 + $0xd0] sm:$0xff]
    %v841 = vld [vmem:[%s5 + $0xd8] sm:$0xff]
    %v842 = vld [vmem:[%s5 + $0xe0] sm:$0xff]
    %v843 = vld [vmem:[%s5 + $0xe8] sm:$0xff]
    %v844 = vld [vmem:[%s5 + $0xf0] sm:$0xff]
    %v845 = vld [vmem:[%s5 + $0xf8] sm:$0xff]
    %v846 = vld [vmem:[%s3] sm:$0x3]
    %848 = vset.pattern.permute.xlu0 0
    %849 = vperm.xlu0 %848, %v814
    %v850 = vpop.permute.xlu0 %849
    %853 = vset.pattern.permute.xlu0 0
    %854 = vperm.xlu0 %853, %v815
    %v855 = vpop.permute.xlu0 %854
    %858 = vset.pattern.permute.xlu0 0
    %859 = vperm.xlu0 %858, %v816
    %v860 = vpop.permute.xlu0 %859
    %863 = vset.pattern.permute.xlu0 0
    %864 = vperm.xlu0 %863, %v817
    %v865 = vpop.permute.xlu0 %864
    %868 = vset.pattern.permute.xlu0 0
    %869 = vperm.xlu0 %868, %v818
    %v870 = vpop.permute.xlu0 %869
    %873 = vset.pattern.permute.xlu0 0
    %874 = vperm.xlu0 %873, %v819
    %v875 = vpop.permute.xlu0 %874
    %878 = vset.pattern.permute.xlu0 0
    %879 = vperm.xlu0 %878, %v820
    %v880 = vpop.permute.xlu0 %879
    %883 = vset.pattern.permute.xlu0 0
    %884 = vperm.xlu0 %883, %v821
    %v885 = vpop.permute.xlu0 %884
    %888 = vset.pattern.permute.xlu0 0
    %889 = vperm.xlu0 %888, %v822
    %v890 = vpop.permute.xlu0 %889
    %893 = vset.pattern.permute.xlu0 0
    %894 = vperm.xlu0 %893, %v823
    %v895 = vpop.permute.xlu0 %894
    %898 = vset.pattern.permute.xlu0 0
    %899 = vperm.xlu0 %898, %v824
    %v900 = vpop.permute.xlu0 %899
    %903 = vset.pattern.permute.xlu0 0
    %904 = vperm.xlu0 %903, %v825
    %v905 = vpop.permute.xlu0 %904
    %908 = vset.pattern.permute.xlu0 0
    %909 = vperm.xlu0 %908, %v826
    %v910 = vpop.permute.xlu0 %909
    %913 = vset.pattern.permute.xlu0 0
    %914 = vperm.xlu0 %913, %v827
    %v915 = vpop.permute.xlu0 %914
    %918 = vset.pattern.permute.xlu0 0
    %919 = vperm.xlu0 %918, %v828
    %v920 = vpop.permute.xlu0 %919
    %923 = vset.pattern.permute.xlu0 0
    %924 = vperm.xlu0 %923, %v829
    %v925 = vpop.permute.xlu0 %924
    %928 = vset.pattern.permute.xlu0 0
    %929 = vperm.xlu0 %928, %v830
    %v930 = vpop.permute.xlu0 %929
    %933 = vset.pattern.permute.xlu0 0
    %934 = vperm.xlu0 %933, %v831
    %v935 = vpop.permute.xlu0 %934
    %938 = vset.pattern.permute.xlu0 0
    %939 = vperm.xlu0 %938, %v832
    %v940 = vpop.permute.xlu0 %939
    %943 = vset.pattern.permute.xlu0 0
    %944 = vperm.xlu0 %943, %v833
    %v945 = vpop.permute.xlu0 %944
    %948 = vset.pattern.permute.xlu0 0
    %949 = vperm.xlu0 %948, %v834
    %v950 = vpop.permute.xlu0 %949
    %953 = vset.pattern.permute.xlu0 0
    %954 = vperm.xlu0 %953, %v835
    %v955 = vpop.permute.xlu0 %954
    %958 = vset.pattern.permute.xlu0 0
    %959 = vperm.xlu0 %958, %v836
    %v960 = vpop.permute.xlu0 %959
    %963 = vset.pattern.permute.xlu0 0
    %964 = vperm.xlu0 %963, %v837
    %v965 = vpop.permute.xlu0 %964
    %968 = vset.pattern.permute.xlu0 0
    %969 = vperm.xlu0 %968, %v838
    %v970 = vpop.permute.xlu0 %969
    %973 = vset.pattern.permute.xlu0 0
    %974 = vperm.xlu0 %973, %v839
    %v975 = vpop.permute.xlu0 %974
    %978 = vset.pattern.permute.xlu0 0
    %979 = vperm.xlu0 %978, %v840
    %v980 = vpop.permute.xlu0 %979
    %983 = vset.pattern.permute.xlu0 0
    %984 = vperm.xlu0 %983, %v841
    %v985 = vpop.permute.xlu0 %984
    %988 = vset.pattern.permute.xlu0 0
    %989 = vperm.xlu0 %988, %v842
    %v990 = vpop.permute.xlu0 %989
    %993 = vset.pattern.permute.xlu0 0
    %994 = vperm.xlu0 %993, %v843
    %v995 = vpop.permute.xlu0 %994
    %998 = vset.pattern.permute.xlu0 0
    %999 = vperm.xlu0 %998, %v844
    %v1000 = vpop.permute.xlu0 %999
    %1003 = vset.pattern.permute.xlu0 0
    %1004 = vperm.xlu0 %1003, %v845
    %v1005 = vpop.permute.xlu0 %1004
    %v1008 = vlaneseq
    %v1009 = vshrl.u32 %v1008, 7
    %v1010 = vsub.s32 0, %v1009
    %v1011 = vrot.slane %v846, %v1010
    %v1012 = vlaneseq
    %v1013 = vshrl.u32 %v1012, 7
    %v1014 = vsub.s32 1, %v1013
    %v1015 = vrot.slane %v846, %v1014
    %vm1018 = vcmp.gt.f32.partialorder %v850, %v1011
    %vm1019 = vcmp.gt.f32.partialorder %v850, %v1015
    %vm1020 = vcmp.gt.f32.partialorder %v855, %v1011
    %vm1021 = vcmp.gt.f32.partialorder %v855, %v1015
    %vm1022 = vcmp.gt.f32.partialorder %v860, %v1011
    %vm1023 = vcmp.gt.f32.partialorder %v860, %v1015
    %vm1024 = vcmp.gt.f32.partialorder %v865, %v1011
    %vm1025 = vcmp.gt.f32.partialorder %v865, %v1015
    %vm1026 = vcmp.gt.f32.partialorder %v870, %v1011
    %vm1027 = vcmp.gt.f32.partialorder %v870, %v1015
    %vm1028 = vcmp.gt.f32.partialorder %v875, %v1011
    %vm1029 = vcmp.gt.f32.partialorder %v875, %v1015
    %vm1030 = vcmp.gt.f32.partialorder %v880, %v1011
    %vm1031 = vcmp.gt.f32.partialorder %v880, %v1015
    %vm1032 = vcmp.gt.f32.partialorder %v885, %v1011
    %vm1033 = vcmp.gt.f32.partialorder %v885, %v1015
    %vm1034 = vcmp.gt.f32.partialorder %v890, %v1011
    %vm1035 = vcmp.gt.f32.partialorder %v890, %v1015
    %vm1036 = vcmp.gt.f32.partialorder %v895, %v1011
    %vm1037 = vcmp.gt.f32.partialorder %v895, %v1015
    %vm1038 = vcmp.gt.f32.partialorder %v900, %v1011
    %vm1039 = vcmp.gt.f32.partialorder %v900, %v1015
    %vm1040 = vcmp.gt.f32.partialorder %v905, %v1011
    %vm1041 = vcmp.gt.f32.partialorder %v905, %v1015
    %vm1042 = vcmp.gt.f32.partialorder %v910, %v1011
    %vm1043 = vcmp.gt.f32.partialorder %v910, %v1015
    %vm1044 = vcmp.gt.f32.partialorder %v915, %v1011
    %vm1045 = vcmp.gt.f32.partialorder %v915, %v1015
    %vm1046 = vcmp.gt.f32.partialorder %v920, %v1011
    %vm1047 = vcmp.gt.f32.partialorder %v920, %v1015
    %vm1048 = vcmp.gt.f32.partialorder %v925, %v1011
    %vm1049 = vcmp.gt.f32.partialorder %v925, %v1015
    %vm1050 = vcmp.gt.f32.partialorder %v930, %v1011
    %vm1051 = vcmp.gt.f32.partialorder %v930, %v1015
    %vm1052 = vcmp.gt.f32.partialorder %v935, %v1011
    %vm1053 = vcmp.gt.f32.partialorder %v935, %v1015
    %vm1054 = vcmp.gt.f32.partialorder %v940, %v1011
    %vm1055 = vcmp.gt.f32.partialorder %v940, %v1015
    %vm1056 = vcmp.gt.f32.partialorder %v945, %v1011
    %vm1057 = vcmp.gt.f32.partialorder %v945, %v1015
    %vm1058 = vcmp.gt.f32.partialorder %v950, %v1011
    %vm1059 = vcmp.gt.f32.partialorder %v950, %v1015
    %vm1060 = vcmp.gt.f32.partialorder %v955, %v1011
    %vm1061 = vcmp.gt.f32.partialorder %v955, %v1015
    %vm1062 = vcmp.gt.f32.partialorder %v960, %v1011
    %vm1063 = vcmp.gt.f32.partialorder %v960, %v1015
    %vm1064 = vcmp.gt.f32.partialorder %v965, %v1011
    %vm1065 = vcmp.gt.f32.partialorder %v965, %v1015
    %vm1066 = vcmp.gt.f32.partialorder %v970, %v1011
    %vm1067 = vcmp.gt.f32.partialorder %v970, %v1015
    %vm1068 = vcmp.gt.f32.partialorder %v975, %v1011
    %vm1069 = vcmp.gt.f32.partialorder %v975, %v1015
    %vm1070 = vcmp.gt.f32.partialorder %v980, %v1011
    %vm1071 = vcmp.gt.f32.partialorder %v980, %v1015
    %vm1072 = vcmp.gt.f32.partialorder %v985, %v1011
    %vm1073 = vcmp.gt.f32.partialorder %v985, %v1015
    %vm1074 = vcmp.gt.f32.partialorder %v990, %v1011
    %vm1075 = vcmp.gt.f32.partialorder %v990, %v1015
    %vm1076 = vcmp.gt.f32.partialorder %v995, %v1011
    %vm1077 = vcmp.gt.f32.partialorder %v995, %v1015
    %vm1078 = vcmp.gt.f32.partialorder %v1000, %v1011
    %vm1079 = vcmp.gt.f32.partialorder %v1000, %v1015
    %vm1080 = vcmp.gt.f32.partialorder %v1005, %v1011
    %vm1081 = vcmp.gt.f32.partialorder %v1005, %v1015
    %v1082 = vld [vmem:[%s4] sm:$0xff]
    %v1083 = vld [vmem:[%s4 + $0x8] sm:$0xff]
    %v1084 = vld [vmem:[%s4 + $0x10] sm:$0xff]
    %v1085 = vld [vmem:[%s4 + $0x18] sm:$0xff]
    %v1086 = vld [vmem:[%s4 + $0x20] sm:$0xff]
    %v1087 = vld [vmem:[%s4 + $0x28] sm:$0xff]
    %v1088 = vld [vmem:[%s4 + $0x30] sm:$0xff]
    %v1089 = vld [vmem:[%s4 + $0x38] sm:$0xff]
    %v1090 = vld [vmem:[%s4 + $0x40] sm:$0xff]
    %v1091 = vld [vmem:[%s4 + $0x48] sm:$0xff]
    %v1092 = vld [vmem:[%s4 + $0x50] sm:$0xff]
    %v1093 = vld [vmem:[%s4 + $0x58] sm:$0xff]
    %v1094 = vld [vmem:[%s4 + $0x60] sm:$0xff]
    %v1095 = vld [vmem:[%s4 + $0x68] sm:$0xff]
    %v1096 = vld [vmem:[%s4 + $0x70] sm:$0xff]
    %v1097 = vld [vmem:[%s4 + $0x78] sm:$0xff]
    %v1098 = vld [vmem:[%s4 + $0x80] sm:$0xff]
    %v1099 = vld [vmem:[%s4 + $0x88] sm:$0xff]
    %v1100 = vld [vmem:[%s4 + $0x90] sm:$0xff]
    %v1101 = vld [vmem:[%s4 + $0x98] sm:$0xff]
    %v1102 = vld [vmem:[%s4 + $0xa0] sm:$0xff]
    %v1103 = vld [vmem:[%s4 + $0xa8] sm:$0xff]
    %v1104 = vld [vmem:[%s4 + $0xb0] sm:$0xff]
    %v1105 = vld [vmem:[%s4 + $0xb8] sm:$0xff]
    %v1106 = vld [vmem:[%s4 + $0xc0] sm:$0xff]
    %v1107 = vld [vmem:[%s4 + $0xc8] sm:$0xff]
    %v1108 = vld [vmem:[%s4 + $0xd0] sm:$0xff]
    %v1109 = vld [vmem:[%s4 + $0xd8] sm:$0xff]
    %v1110 = vld [vmem:[%s4 + $0xe0] sm:$0xff]
    %v1111 = vld [vmem:[%s4 + $0xe8] sm:$0xff]
    %v1112 = vld [vmem:[%s4 + $0xf0] sm:$0xff]
    %v1113 = vld [vmem:[%s4 + $0xf8] sm:$0xff]
    %v1114 = vld [vmem:[%s2] sm:$0x3]
    %1115 = vset.pattern.permute.xlu0 0
    %1116 = vperm.xlu0 %1115, %v1082
    %v1117 = vpop.permute.xlu0 %1116
    %1118 = vset.pattern.permute.xlu0 0
    %1119 = vperm.xlu0 %1118, %v1083
    %v1120 = vpop.permute.xlu0 %1119
    %1121 = vset.pattern.permute.xlu0 0
    %1122 = vperm.xlu0 %1121, %v1084
    %v1123 = vpop.permute.xlu0 %1122
    %1124 = vset.pattern.permute.xlu0 0
    %1125 = vperm.xlu0 %1124, %v1085
    %v1126 = vpop.permute.xlu0 %1125
    %1127 = vset.pattern.permute.xlu0 0
    %1128 = vperm.xlu0 %1127, %v1086
    %v1129 = vpop.permute.xlu0 %1128
    %1130 = vset.pattern.permute.xlu0 0
    %1131 = vperm.xlu0 %1130, %v1087
    %v1132 = vpop.permute.xlu0 %1131
    %1133 = vset.pattern.permute.xlu0 0
    %1134 = vperm.xlu0 %1133, %v1088
    %v1135 = vpop.permute.xlu0 %1134
    %1136 = vset.pattern.permute.xlu0 0
    %1137 = vperm.xlu0 %1136, %v1089
    %v1138 = vpop.permute.xlu0 %1137
    %1139 = vset.pattern.permute.xlu0 0
    %1140 = vperm.xlu0 %1139, %v1090
    %v1141 = vpop.permute.xlu0 %1140
    %1142 = vset.pattern.permute.xlu0 0
    %1143 = vperm.xlu0 %1142, %v1091
    %v1144 = vpop.permute.xlu0 %1143
    %1145 = vset.pattern.permute.xlu0 0
    %1146 = vperm.xlu0 %1145, %v1092
    %v1147 = vpop.permute.xlu0 %1146
    %1148 = vset.pattern.permute.xlu0 0
    %1149 = vperm.xlu0 %1148, %v1093
    %v1150 = vpop.permute.xlu0 %1149
    %1151 = vset.pattern.permute.xlu0 0
    %1152 = vperm.xlu0 %1151, %v1094
    %v1153 = vpop.permute.xlu0 %1152
    %1154 = vset.pattern.permute.xlu0 0
    %1155 = vperm.xlu0 %1154, %v1095
    %v1156 = vpop.permute.xlu0 %1155
    %1157 = vset.pattern.permute.xlu0 0
    %1158 = vperm.xlu0 %1157, %v1096
    %v1159 = vpop.permute.xlu0 %1158
    %1160 = vset.pattern.permute.xlu0 0
    %1161 = vperm.xlu0 %1160, %v1097
    %v1162 = vpop.permute.xlu0 %1161
    %1163 = vset.pattern.permute.xlu0 0
    %1164 = vperm.xlu0 %1163, %v1098
    %v1165 = vpop.permute.xlu0 %1164
    %1166 = vset.pattern.permute.xlu0 0
    %1167 = vperm.xlu0 %1166, %v1099
    %v1168 = vpop.permute.xlu0 %1167
    %1169 = vset.pattern.permute.xlu0 0
    %1170 = vperm.xlu0 %1169, %v1100
    %v1171 = vpop.permute.xlu0 %1170
    %1172 = vset.pattern.permute.xlu0 0
    %1173 = vperm.xlu0 %1172, %v1101
    %v1174 = vpop.permute.xlu0 %1173
    %1175 = vset.pattern.permute.xlu0 0
    %1176 = vperm.xlu0 %1175, %v1102
    %v1177 = vpop.permute.xlu0 %1176
    %1178 = vset.pattern.permute.xlu0 0
    %1179 = vperm.xlu0 %1178, %v1103
    %v1180 = vpop.permute.xlu0 %1179
    %1181 = vset.pattern.permute.xlu0 0
    %1182 = vperm.xlu0 %1181, %v1104
    %v1183 = vpop.permute.xlu0 %1182
    %1184 = vset.pattern.permute.xlu0 0
    %1185 = vperm.xlu0 %1184, %v1105
    %v1186 = vpop.permute.xlu0 %1185
    %1187 = vset.pattern.permute.xlu0 0
    %1188 = vperm.xlu0 %1187, %v1106
    %v1189 = vpop.permute.xlu0 %1188
    %1190 = vset.pattern.permute.xlu0 0
    %1191 = vperm.xlu0 %1190, %v1107
    %v1192 = vpop.permute.xlu0 %1191
    %1193 = vset.pattern.permute.xlu0 0
    %1194 = vperm.xlu0 %1193, %v1108
    %v1195 = vpop.permute.xlu0 %1194
    %1196 = vset.pattern.permute.xlu0 0
    %1197 = vperm.xlu0 %1196, %v1109
    %v1198 = vpop.permute.xlu0 %1197
    %1199 = vset.pattern.permute.xlu0 0
    %1200 = vperm.xlu0 %1199, %v1110
    %v1201 = vpop.permute.xlu0 %1200
    %1202 = vset.pattern.permute.xlu0 0
    %1203 = vperm.xlu0 %1202, %v1111
    %v1204 = vpop.permute.xlu0 %1203
    %1205 = vset.pattern.permute.xlu0 0
    %1206 = vperm.xlu0 %1205, %v1112
    %v1207 = vpop.permute.xlu0 %1206
    %1208 = vset.pattern.permute.xlu0 0
    %1209 = vperm.xlu0 %1208, %v1113
    %v1210 = vpop.permute.xlu0 %1209
    %v1211 = vlaneseq
    %v1212 = vshrl.u32 %v1211, 7
    %v1213 = vsub.s32 0, %v1212
    %v1214 = vrot.slane %v1114, %v1213
    %v1215 = vlaneseq
    %v1216 = vshrl.u32 %v1215, 7
    %v1217 = vsub.s32 1, %v1216
    %v1218 = vrot.slane %v1114, %v1217
    %vm1219 = vcmp.eq.s32.totalorder %v1117, %v1214
    %vm1220 = vcmp.eq.s32.totalorder %v1117, %v1218
    %vm1221 = vcmp.eq.s32.totalorder %v1120, %v1214
    %vm1222 = vcmp.eq.s32.totalorder %v1120, %v1218
    %vm1223 = vcmp.eq.s32.totalorder %v1123, %v1214
    %vm1224 = vcmp.eq.s32.totalorder %v1123, %v1218
    %vm1225 = vcmp.eq.s32.totalorder %v1126, %v1214
    %vm1226 = vcmp.eq.s32.totalorder %v1126, %v1218
    %vm1227 = vcmp.eq.s32.totalorder %v1129, %v1214
    %vm1228 = vcmp.eq.s32.totalorder %v1129, %v1218
    %vm1229 = vcmp.eq.s32.totalorder %v1132, %v1214
    %vm1230 = vcmp.eq.s32.totalorder %v1132, %v1218
    %vm1231 = vcmp.eq.s32.totalorder %v1135, %v1214
    %vm1232 = vcmp.eq.s32.totalorder %v1135, %v1218
    %vm1233 = vcmp.eq.s32.totalorder %v1138, %v1214
    %vm1234 = vcmp.eq.s32.totalorder %v1138, %v1218
    %vm1235 = vcmp.eq.s32.totalorder %v1141, %v1214
    %vm1236 = vcmp.eq.s32.totalorder %v1141, %v1218
    %vm1237 = vcmp.eq.s32.totalorder %v1144, %v1214
    %vm1238 = vcmp.eq.s32.totalorder %v1144, %v1218
    %vm1239 = vcmp.eq.s32.totalorder %v1147, %v1214
    %vm1240 = vcmp.eq.s32.totalorder %v1147, %v1218
    %vm1241 = vcmp.eq.s32.totalorder %v1150, %v1214
    %vm1242 = vcmp.eq.s32.totalorder %v1150, %v1218
    %vm1243 = vcmp.eq.s32.totalorder %v1153, %v1214
    %vm1244 = vcmp.eq.s32.totalorder %v1153, %v1218
    %vm1245 = vcmp.eq.s32.totalorder %v1156, %v1214
    %vm1246 = vcmp.eq.s32.totalorder %v1156, %v1218
    %vm1247 = vcmp.eq.s32.totalorder %v1159, %v1214
    %vm1248 = vcmp.eq.s32.totalorder %v1159, %v1218
    %vm1249 = vcmp.eq.s32.totalorder %v1162, %v1214
    %vm1250 = vcmp.eq.s32.totalorder %v1162, %v1218
    %vm1251 = vcmp.eq.s32.totalorder %v1165, %v1214
    %vm1252 = vcmp.eq.s32.totalorder %v1165, %v1218
    %vm1253 = vcmp.eq.s32.totalorder %v1168, %v1214
    %vm1254 = vcmp.eq.s32.totalorder %v1168, %v1218
    %vm1255 = vcmp.eq.s32.totalorder %v1171, %v1214
    %vm1256 = vcmp.eq.s32.totalorder %v1171, %v1218
    %vm1257 = vcmp.eq.s32.totalorder %v1174, %v1214
    %vm1258 = vcmp.eq.s32.totalorder %v1174, %v1218
    %vm1259 = vcmp.eq.s32.totalorder %v1177, %v1214
    %vm1260 = vcmp.eq.s32.totalorder %v1177, %v1218
    %vm1261 = vcmp.eq.s32.totalorder %v1180, %v1214
    %vm1262 = vcmp.eq.s32.totalorder %v1180, %v1218
    %vm1263 = vcmp.eq.s32.totalorder %v1183, %v1214
    %vm1264 = vcmp.eq.s32.totalorder %v1183, %v1218
    %vm1265 = vcmp.eq.s32.totalorder %v1186, %v1214
    %vm1266 = vcmp.eq.s32.totalorder %v1186, %v1218
    %vm1267 = vcmp.eq.s32.totalorder %v1189, %v1214
    %vm1268 = vcmp.eq.s32.totalorder %v1189, %v1218
    %vm1269 = vcmp.eq.s32.totalorder %v1192, %v1214
    %vm1270 = vcmp.eq.s32.totalorder %v1192, %v1218
    %vm1271 = vcmp.eq.s32.totalorder %v1195, %v1214
    %vm1272 = vcmp.eq.s32.totalorder %v1195, %v1218
    %vm1273 = vcmp.eq.s32.totalorder %v1198, %v1214
    %vm1274 = vcmp.eq.s32.totalorder %v1198, %v1218
    %vm1275 = vcmp.eq.s32.totalorder %v1201, %v1214
    %vm1276 = vcmp.eq.s32.totalorder %v1201, %v1218
    %vm1277 = vcmp.eq.s32.totalorder %v1204, %v1214
    %vm1278 = vcmp.eq.s32.totalorder %v1204, %v1218
    %vm1279 = vcmp.eq.s32.totalorder %v1207, %v1214
    %vm1280 = vcmp.eq.s32.totalorder %v1207, %v1218
    %vm1281 = vcmp.eq.s32.totalorder %v1210, %v1214
    %vm1282 = vcmp.eq.s32.totalorder %v1210, %v1218
    %vm1283 = vmand %vm1219, %vm1018
    %vm1284 = vmand %vm1220, %vm1019
    %vm1285 = vmand %vm1221, %vm1020
    %vm1286 = vmand %vm1222, %vm1021
    %vm1287 = vmand %vm1223, %vm1022
    %vm1288 = vmand %vm1224, %vm1023
    %vm1289 = vmand %vm1225, %vm1024
    %vm1290 = vmand %vm1226, %vm1025
    %vm1291 = vmand %vm1227, %vm1026
    %vm1292 = vmand %vm1228, %vm1027
    %vm1293 = vmand %vm1229, %vm1028
    %vm1294 = vmand %vm1230, %vm1029
    %vm1295 = vmand %vm1231, %vm1030
    %vm1296 = vmand %vm1232, %vm1031
    %vm1297 = vmand %vm1233, %vm1032
    %vm1298 = vmand %vm1234, %vm1033
    %vm1299 = vmand %vm1235, %vm1034
    %vm1300 = vmand %vm1236, %vm1035
    %vm1301 = vmand %vm1237, %vm1036
    %vm1302 = vmand %vm1238, %vm1037
    %vm1303 = vmand %vm1239, %vm1038
    %vm1304 = vmand %vm1240, %vm1039
    %vm1305 = vmand %vm1241, %vm1040
    %vm1306 = vmand %vm1242, %vm1041
    %vm1307 = vmand %vm1243, %vm1042
    %vm1308 = vmand %vm1244, %vm1043
    %vm1309 = vmand %vm1245, %vm1044
    %vm1310 = vmand %vm1246, %vm1045
    %vm1311 = vmand %vm1247, %vm1046
    %vm1312 = vmand %vm1248, %vm1047
    %vm1313 = vmand %vm1249, %vm1048
    %vm1314 = vmand %vm1250, %vm1049
    %vm1315 = vmand %vm1251, %vm1050
    %vm1316 = vmand %vm1252, %vm1051
    %vm1317 = vmand %vm1253, %vm1052
    %vm1318 = vmand %vm1254, %vm1053
    %vm1319 = vmand %vm1255, %vm1054
    %vm1320 = vmand %vm1256, %vm1055
    %vm1321 = vmand %vm1257, %vm1056
    %vm1322 = vmand %vm1258, %vm1057
    %vm1323 = vmand %vm1259, %vm1058
    %vm1324 = vmand %vm1260, %vm1059
    %vm1325 = vmand %vm1261, %vm1060
    %vm1326 = vmand %vm1262, %vm1061
    %vm1327 = vmand %vm1263, %vm1062
    %vm1328 = vmand %vm1264, %vm1063
    %vm1329 = vmand %vm1265, %vm1064
    %vm1330 = vmand %vm1266, %vm1065
    %vm1331 = vmand %vm1267, %vm1066
    %vm1332 = vmand %vm1268, %vm1067
    %vm1333 = vmand %vm1269, %vm1068
    %vm1334 = vmand %vm1270, %vm1069
    %vm1335 = vmand %vm1271, %vm1070
    %vm1336 = vmand %vm1272, %vm1071
    %vm1337 = vmand %vm1273, %vm1072
    %vm1338 = vmand %vm1274, %vm1073
    %vm1339 = vmand %vm1275, %vm1074
    %vm1340 = vmand %vm1276, %vm1075
    %vm1341 = vmand %vm1277, %vm1076
    %vm1342 = vmand %vm1278, %vm1077
    %vm1343 = vmand %vm1279, %vm1078
    %vm1344 = vmand %vm1280, %vm1079
    %vm1345 = vmand %vm1281, %vm1080
    %vm1346 = vmand %vm1282, %vm1081
    %v1347 = vsel %vm1283, 1, 0
    %v1348 = vsel %vm1284, 1, 0
    %v1349 = vsel %vm1285, 1, 0
    %v1350 = vsel %vm1286, 1, 0
    %v1351 = vsel %vm1287, 1, 0
    %v1352 = vsel %vm1288, 1, 0
    %v1353 = vsel %vm1289, 1, 0
    %v1354 = vsel %vm1290, 1, 0
    %v1355 = vsel %vm1291, 1, 0
    %v1356 = vsel %vm1292, 1, 0
    %v1357 = vsel %vm1293, 1, 0
    %v1358 = vsel %vm1294, 1, 0
    %v1359 = vsel %vm1295, 1, 0
    %v1360 = vsel %vm1296, 1, 0
    %v1361 = vsel %vm1297, 1, 0
    %v1362 = vsel %vm1298, 1, 0
    %v1363 = vsel %vm1299, 1, 0
    %v1364 = vsel %vm1300, 1, 0
    %v1365 = vsel %vm1301, 1, 0
    %v1366 = vsel %vm1302, 1, 0
    %v1367 = vsel %vm1303, 1, 0
    %v1368 = vsel %vm1304, 1, 0
    %v1369 = vsel %vm1305, 1, 0
    %v1370 = vsel %vm1306, 1, 0
    %v1371 = vsel %vm1307, 1, 0
    %v1372 = vsel %vm1308, 1, 0
    %v1373 = vsel %vm1309, 1, 0
    %v1374 = vsel %vm1310, 1, 0
    %v1375 = vsel %vm1311, 1, 0
    %v1376 = vsel %vm1312, 1, 0
    %v1377 = vsel %vm1313, 1, 0
    %v1378 = vsel %vm1314, 1, 0
    %v1379 = vsel %vm1315, 1, 0
    %v1380 = vsel %vm1316, 1, 0
    %v1381 = vsel %vm1317, 1, 0
    %v1382 = vsel %vm1318, 1, 0
    %v1383 = vsel %vm1319, 1, 0
    %v1384 = vsel %vm1320, 1, 0
    %v1385 = vsel %vm1321, 1, 0
    %v1386 = vsel %vm1322, 1, 0
    %v1387 = vsel %vm1323, 1, 0
    %v1388 = vsel %vm1324, 1, 0
    %v1389 = vsel %vm1325, 1, 0
    %v1390 = vsel %vm1326, 1, 0
    %v1391 = vsel %vm1327, 1, 0
    %v1392 = vsel %vm1328, 1, 0
    %v1393 = vsel %vm1329, 1, 0
    %v1394 = vsel %vm1330, 1, 0
    %v1395 = vsel %vm1331, 1, 0
    %v1396 = vsel %vm1332, 1, 0
    %v1397 = vsel %vm1333, 1, 0
    %v1398 = vsel %vm1334, 1, 0
    %v1399 = vsel %vm1335, 1, 0
    %v1400 = vsel %vm1336, 1, 0
    %v1401 = vsel %vm1337, 1, 0
    %v1402 = vsel %vm1338, 1, 0
    %v1403 = vsel %vm1339, 1, 0
    %v1404 = vsel %vm1340, 1, 0
    %v1405 = vsel %vm1341, 1, 0
    %v1406 = vsel %vm1342, 1, 0
    %v1407 = vsel %vm1343, 1, 0
    %v1408 = vsel %vm1344, 1, 0
    %v1409 = vsel %vm1345, 1, 0
    %v1410 = vsel %vm1346, 1, 0
    %v1411 = vcvt.s32.f32 %v1347
    %v1412 = vcvt.s32.f32 %v1348
    %v1413 = vcvt.s32.f32 %v1349
    %v1414 = vcvt.s32.f32 %v1350
    %v1415 = vcvt.s32.f32 %v1351
    %v1416 = vcvt.s32.f32 %v1352
    %v1417 = vcvt.s32.f32 %v1353
    %v1418 = vcvt.s32.f32 %v1354
    %v1419 = vcvt.s32.f32 %v1355
    %v1420 = vcvt.s32.f32 %v1356
    %v1421 = vcvt.s32.f32 %v1357
    %v1422 = vcvt.s32.f32 %v1358
    %v1423 = vcvt.s32.f32 %v1359
    %v1424 = vcvt.s32.f32 %v1360
    %v1425 = vcvt.s32.f32 %v1361
    %v1426 = vcvt.s32.f32 %v1362
    %v1427 = vcvt.s32.f32 %v1363
    %v1428 = vcvt.s32.f32 %v1364
    %v1429 = vcvt.s32.f32 %v1365
    %v1430 = vcvt.s32.f32 %v1366
    %v1431 = vcvt.s32.f32 %v1367
    %v1432 = vcvt.s32.f32 %v1368
    %v1433 = vcvt.s32.f32 %v1369
    %v1434 = vcvt.s32.f32 %v1370
    %v1435 = vcvt.s32.f32 %v1371
    %v1436 = vcvt.s32.f32 %v1372
    %v1437 = vcvt.s32.f32 %v1373
    %v1438 = vcvt.s32.f32 %v1374
    %v1439 = vcvt.s32.f32 %v1375
    %v1440 = vcvt.s32.f32 %v1376
    %v1441 = vcvt.s32.f32 %v1377
    %v1442 = vcvt.s32.f32 %v1378
    %v1443 = vcvt.s32.f32 %v1379
    %v1444 = vcvt.s32.f32 %v1380
    %v1445 = vcvt.s32.f32 %v1381
    %v1446 = vcvt.s32.f32 %v1382
    %v1447 = vcvt.s32.f32 %v1383
    %v1448 = vcvt.s32.f32 %v1384
    %v1449 = vcvt.s32.f32 %v1385
    %v1450 = vcvt.s32.f32 %v1386
    %v1451 = vcvt.s32.f32 %v1387
    %v1452 = vcvt.s32.f32 %v1388
    %v1453 = vcvt.s32.f32 %v1389
    %v1454 = vcvt.s32.f32 %v1390
    %v1455 = vcvt.s32.f32 %v1391
    %v1456 = vcvt.s32.f32 %v1392
    %v1457 = vcvt.s32.f32 %v1393
    %v1458 = vcvt.s32.f32 %v1394
    %v1459 = vcvt.s32.f32 %v1395
    %v1460 = vcvt.s32.f32 %v1396
    %v1461 = vcvt.s32.f32 %v1397
    %v1462 = vcvt.s32.f32 %v1398
    %v1463 = vcvt.s32.f32 %v1399
    %v1464 = vcvt.s32.f32 %v1400
    %v1465 = vcvt.s32.f32 %v1401
    %v1466 = vcvt.s32.f32 %v1402
    %v1467 = vcvt.s32.f32 %v1403
    %v1468 = vcvt.s32.f32 %v1404
    %v1469 = vcvt.s32.f32 %v1405
    %v1470 = vcvt.s32.f32 %v1406
    %v1471 = vcvt.s32.f32 %v1407
    %v1472 = vcvt.s32.f32 %v1408
    %v1473 = vcvt.s32.f32 %v1409
    %v1474 = vcvt.s32.f32 %v1410
    %v1475 = vpack.c.bf16 %v1413, %v1411
    %v1476 = vpack.c.bf16 %v1414, %v1412
    %v1477 = vpack.c.bf16 %v1417, %v1415
    %v1478 = vpack.c.bf16 %v1418, %v1416
    %v1479 = vpack.c.bf16 %v1421, %v1419
    %v1480 = vpack.c.bf16 %v1422, %v1420
    %v1481 = vpack.c.bf16 %v1425, %v1423
    %v1482 = vpack.c.bf16 %v1426, %v1424
    %v1483 = vpack.c.bf16 %v1429, %v1427
    %v1484 = vpack.c.bf16 %v1430, %v1428
    %v1485 = vpack.c.bf16 %v1433, %v1431
    %v1486 = vpack.c.bf16 %v1434, %v1432
    %v1487 = vpack.c.bf16 %v1437, %v1435
    %v1488 = vpack.c.bf16 %v1438, %v1436
    %v1489 = vpack.c.bf16 %v1441, %v1439
    %v1490 = vpack.c.bf16 %v1442, %v1440
    %v1491 = vpack.c.bf16 %v1445, %v1443
    %v1492 = vpack.c.bf16 %v1446, %v1444
    %v1493 = vpack.c.bf16 %v1449, %v1447
    %v1494 = vpack.c.bf16 %v1450, %v1448
    %v1495 = vpack.c.bf16 %v1453, %v1451
    %v1496 = vpack.c.bf16 %v1454, %v1452
    %v1497 = vpack.c.bf16 %v1457, %v1455
    %v1498 = vpack.c.bf16 %v1458, %v1456
    %v1499 = vpack.c.bf16 %v1461, %v1459
    %v1500 = vpack.c.bf16 %v1462, %v1460
    %v1501 = vpack.c.bf16 %v1465, %v1463
    %v1502 = vpack.c.bf16 %v1466, %v1464
    %v1503 = vpack.c.bf16 %v1469, %v1467
    %v1504 = vpack.c.bf16 %v1470, %v1468
    %v1505 = vpack.c.bf16 %v1473, %v1471
    %v1506 = vpack.c.bf16 %v1474, %v1472
    %v1507 = vld [vmem:[#allocation2] sm:$0x3]
    %1508 = vmatprep.subr.bf16.mxu0 %v1476
    %1509 = vmatpush1.bf16.msra.mxu0 %v1475
    %1510 = vmatprep.subr.bf16.mxu0 %v1478
    %1511 = vmatpush1.bf16.msra.mxu0 %v1477
    %1512 = vmatprep.subr.bf16.mxu0 %v1480
    %1513 = vmatpush1.bf16.msra.mxu0 %v1479
    %1514 = vmatprep.subr.bf16.mxu0 %v1482
    %1515 = vmatpush1.bf16.msra.mxu0 %v1481
    %1516 = vmatprep.subr.bf16.mxu0 %v1484
    %1517 = vmatpush1.bf16.msra.mxu0 %v1483
    %1518 = vmatprep.subr.bf16.mxu0 %v1486
    %1519 = vmatpush1.bf16.msra.mxu0 %v1485
    %1520 = vmatprep.subr.bf16.mxu0 %v1488
    %1521 = vmatpush1.bf16.msra.mxu0 %v1487
    %1522 = vmatprep.subr.bf16.mxu0 %v1490
    %1523 = vmatpush1.bf16.msra.mxu0 %v1489
    %1524 = vmatprep.subr.bf16.mxu0 %v1492
    %1525 = vmatpush1.bf16.msra.mxu0 %v1491
    %1526 = vmatprep.subr.bf16.mxu0 %v1494
    %1527 = vmatpush1.bf16.msra.mxu0 %v1493
    %1528 = vmatprep.subr.bf16.mxu0 %v1496
    %1529 = vmatpush1.bf16.msra.mxu0 %v1495
    %1530 = vmatprep.subr.bf16.mxu0 %v1498
    %1531 = vmatpush1.bf16.msra.mxu0 %v1497
    %1532 = vmatprep.subr.bf16.mxu0 %v1500
    %1533 = vmatpush1.bf16.msra.mxu0 %v1499
    %1534 = vmatprep.subr.bf16.mxu0 %v1502
    %1535 = vmatpush1.bf16.msra.mxu0 %v1501
    %1536 = vmatprep.subr.bf16.mxu0 %v1504
    %1537 = vmatpush1.bf16.msra.mxu0 %v1503
    %1538 = vmatprep.subr.bf16.mxu0 %v1506
    %1539 = vmatpush1.bf16.msra.mxu0 %v1505
    %1540 = vmatprep.mubr.bf16.mxu0 1065369472
    %1541 = vmatmul.mubr.bf16.gmra.mrb[0].mxu0 1065369472
    %v1542 = vpop.f32.mrb[0].mxu0
    %v1543 = vadd.f32 0.0, %v1542
    %v1544 = vpop.f32.mrb[0].mxu0
    %v1545 = vadd.f32 0.0, %v1544
    %v1546 = vpop.f32.mrb[0].mxu0
    %v1547 = vpop.f32.mrb[0].mxu0
    %1548 = vdwg.mxu0
    %v1551 = vcombine.low %v1543, %v1545
    %v1553 = vunpack.c.l.s4 1966171168
    %v1554 = vunpack.c.0.s8 %v1553
    %v1555 = vlaneseq
    %v1556 = vshrl.u32 %v1555, 7
    %v1557 = vsub.s32 %v1554, %v1556
    %v1558 = vrot.slane %v1551, %v1557
    %v1560 = vunpack.c.l.s4 1966171168
    %v1561 = vunpack.c.0.s8 %v1560
    %v1562 = vlaneseq
    %v1563 = vshrl.u32 %v1562, 7
    %v1564 = vsub.s32 %v1561, %v1563
    %v1565 = vrot.slane %v1558, %v1564
    %v1567 = vadd.f32 %v1507, %v1565
    %v1568 = vlaneseq
    %vm1569 = vcmp.ge.s32.totalorder %v1568, 0
    %vm1570 = vcmp.lt.s32.totalorder %v1568, 256
    %vm1571 = vmand %vm1569, %vm1570
    %1572 = vst.msk [vmem:[#allocation2] sm:$0x3] %vm1571, %v1567
  $region29: #{_pipeline.1} parent=0 // pred_fallthru
    _
  %p1573 = pnand %p38, %p46
  %p1574 = pneg %p1573
  // Predicated region
  $region30: #{_pipeline.1} parent=0 // pred_check
    _
  $region31: #{_pipeline.1} parent=0 // pred_check_branch
    %1576 = sbr.rel (%p1573) target = $region33
  $region32: #{_pipeline.1} parent=0 // pred_region
    %v1577 = vlaneseq
    %v1578 = vshrl.u32 %v1577, 7
    %v1579 = vadd.s32 %v1578, 8
    %v1580 = vadd.s32 %v1578, 16
    %v1581 = vadd.s32 %v1578, 24
    %v1582 = vadd.s32 %v1578, 32
    %v1583 = vadd.s32 %v1578, 40
    %v1584 = vadd.s32 %v1578, 48
    %v1585 = vadd.s32 %v1578, 56
    %v1586 = vadd.s32 %v1578, 64
    %v1587 = vadd.s32 %v1578, 72
    %v1588 = vadd.s32 %v1578, 80
    %v1589 = vadd.s32 %v1578, 88
    %v1590 = vadd.s32 %v1578, 96
    %v1591 = vadd.s32 %v1578, 104
    %v1592 = vadd.s32 %v1578, 112
    %v1593 = vadd.s32 %v1578, 120
    %v1594 = vadd.s32 %v1578, 128
    %v1595 = vadd.s32 %v1578, 136
    %v1596 = vadd.s32 %v1578, 144
    %v1597 = vadd.s32 %v1578, 152
    %v1598 = vadd.s32 %v1578, 160
    %v1599 = vadd.s32 %v1578, 168
    %v1600 = vadd.s32 %v1578, 176
    %v1601 = vadd.s32 %v1578, 184
    %v1602 = vadd.s32 %v1578, 192
    %v1603 = vadd.s32 %v1578, 200
    %v1604 = vadd.s32 %v1578, 208
    %v1605 = vadd.s32 %v1578, 216
    %v1606 = vadd.s32 %v1578, 224
    %v1607 = vadd.s32 %v1578, 232
    %v1608 = vadd.s32 %v1578, 240
    %v1609 = vadd.s32 %v1578, 248
    %v1610 = vstv %s39
    %v1611 = vadd.s32 %v1578, %v1610
    %v1612 = vadd.s32 %v1579, %v1610
    %v1613 = vadd.s32 %v1580, %v1610
    %v1614 = vadd.s32 %v1581, %v1610
    %v1615 = vadd.s32 %v1582, %v1610
    %v1616 = vadd.s32 %v1583, %v1610
    %v1617 = vadd.s32 %v1584, %v1610
    %v1618 = vadd.s32 %v1585, %v1610
    %v1619 = vadd.s32 %v1586, %v1610
    %v1620 = vadd.s32 %v1587, %v1610
    %v1621 = vadd.s32 %v1588, %v1610
    %v1622 = vadd.s32 %v1589, %v1610
    %v1623 = vadd.s32 %v1590, %v1610
    %v1624 = vadd.s32 %v1591, %v1610
    %v1625 = vadd.s32 %v1592, %v1610
    %v1626 = vadd.s32 %v1593, %v1610
    %v1627 = vadd.s32 %v1594, %v1610
    %v1628 = vadd.s32 %v1595, %v1610
    %v1629 = vadd.s32 %v1596, %v1610
    %v1630 = vadd.s32 %v1597, %v1610
    %v1631 = vadd.s32 %v1598, %v1610
    %v1632 = vadd.s32 %v1599, %v1610
    %v1633 = vadd.s32 %v1600, %v1610
    %v1634 = vadd.s32 %v1601, %v1610
    %v1635 = vadd.s32 %v1602, %v1610
    %v1636 = vadd.s32 %v1603, %v1610
    %v1637 = vadd.s32 %v1604, %v1610
    %v1638 = vadd.s32 %v1605, %v1610
    %v1639 = vadd.s32 %v1606, %v1610
    %v1640 = vadd.s32 %v1607, %v1610
    %v1641 = vadd.s32 %v1608, %v1610
    %v1642 = vadd.s32 %v1609, %v1610
    %v1643 = vlaneseq
    %v1644 = vand.u32 %v1643, 127
    %v1645 = vadd.s32 %v1644, 128
    %v1646 = vstv %s40
    %v1647 = vadd.s32 %v1644, %v1646
    %v1648 = vadd.s32 %v1645, %v1646
    %v1649 = vld [vmem:[%s5] sm:$0xff]
    %v1650 = vld [vmem:[%s5 + $0x8] sm:$0xff]
    %v1651 = vld [vmem:[%s5 + $0x10] sm:$0xff]
    %v1652 = vld [vmem:[%s5 + $0x18] sm:$0xff]
    %v1653 = vld [vmem:[%s5 + $0x20] sm:$0xff]
    %v1654 = vld [vmem:[%s5 + $0x28] sm:$0xff]
    %v1655 = vld [vmem:[%s5 + $0x30] sm:$0xff]
    %v1656 = vld [vmem:[%s5 + $0x38] sm:$0xff]
    %v1657 = vld [vmem:[%s5 + $0x40] sm:$0xff]
    %v1658 = vld [vmem:[%s5 + $0x48] sm:$0xff]
    %v1659 = vld [vmem:[%s5 + $0x50] sm:$0xff]
    %v1660 = vld [vmem:[%s5 + $0x58] sm:$0xff]
    %v1661 = vld [vmem:[%s5 + $0x60] sm:$0xff]
    %v1662 = vld [vmem:[%s5 + $0x68] sm:$0xff]
    %v1663 = vld [vmem:[%s5 + $0x70] sm:$0xff]
    %v1664 = vld [vmem:[%s5 + $0x78] sm:$0xff]
    %v1665 = vld [vmem:[%s5 + $0x80] sm:$0xff]
    %v1666 = vld [vmem:[%s5 + $0x88] sm:$0xff]
    %v1667 = vld [vmem:[%s5 + $0x90] sm:$0xff]
    %v1668 = vld [vmem:[%s5 + $0x98] sm:$0xff]
    %v1669 = vld [vmem:[%s5 + $0xa0] sm:$0xff]
    %v1670 = vld [vmem:[%s5 + $0xa8] sm:$0xff]
    %v1671 = vld [vmem:[%s5 + $0xb0] sm:$0xff]
    %v1672 = vld [vmem:[%s5 + $0xb8] sm:$0xff]
    %v1673 = vld [vmem:[%s5 + $0xc0] sm:$0xff]
    %v1674 = vld [vmem:[%s5 + $0xc8] sm:$0xff]
    %v1675 = vld [vmem:[%s5 + $0xd0] sm:$0xff]
    %v1676 = vld [vmem:[%s5 + $0xd8] sm:$0xff]
    %v1677 = vld [vmem:[%s5 + $0xe0] sm:$0xff]
    %v1678 = vld [vmem:[%s5 + $0xe8] sm:$0xff]
    %v1679 = vld [vmem:[%s5 + $0xf0] sm:$0xff]
    %v1680 = vld [vmem:[%s5 + $0xf8] sm:$0xff]
    %v1681 = vld [vmem:[%s3] sm:$0x3]
    %1683 = vset.pattern.permute.xlu0 0
    %1684 = vperm.xlu0 %1683, %v1649
    %v1685 = vpop.permute.xlu0 %1684
    %1688 = vset.pattern.permute.xlu0 0
    %1689 = vperm.xlu0 %1688, %v1650
    %v1690 = vpop.permute.xlu0 %1689
    %1693 = vset.pattern.permute.xlu0 0
    %1694 = vperm.xlu0 %1693, %v1651
    %v1695 = vpop.permute.xlu0 %1694
    %1698 = vset.pattern.permute.xlu0 0
    %1699 = vperm.xlu0 %1698, %v1652
    %v1700 = vpop.permute.xlu0 %1699
    %1703 = vset.pattern.permute.xlu0 0
    %1704 = vperm.xlu0 %1703, %v1653
    %v1705 = vpop.permute.xlu0 %1704
    %1708 = vset.pattern.permute.xlu0 0
    %1709 = vperm.xlu0 %1708, %v1654
    %v1710 = vpop.permute.xlu0 %1709
    %1713 = vset.pattern.permute.xlu0 0
    %1714 = vperm.xlu0 %1713, %v1655
    %v1715 = vpop.permute.xlu0 %1714
    %1718 = vset.pattern.permute.xlu0 0
    %1719 = vperm.xlu0 %1718, %v1656
    %v1720 = vpop.permute.xlu0 %1719
    %1723 = vset.pattern.permute.xlu0 0
    %1724 = vperm.xlu0 %1723, %v1657
    %v1725 = vpop.permute.xlu0 %1724
    %1728 = vset.pattern.permute.xlu0 0
    %1729 = vperm.xlu0 %1728, %v1658
    %v1730 = vpop.permute.xlu0 %1729
    %1733 = vset.pattern.permute.xlu0 0
    %1734 = vperm.xlu0 %1733, %v1659
    %v1735 = vpop.permute.xlu0 %1734
    %1738 = vset.pattern.permute.xlu0 0
    %1739 = vperm.xlu0 %1738, %v1660
    %v1740 = vpop.permute.xlu0 %1739
    %1743 = vset.pattern.permute.xlu0 0
    %1744 = vperm.xlu0 %1743, %v1661
    %v1745 = vpop.permute.xlu0 %1744
    %1748 = vset.pattern.permute.xlu0 0
    %1749 = vperm.xlu0 %1748, %v1662
    %v1750 = vpop.permute.xlu0 %1749
    %1753 = vset.pattern.permute.xlu0 0
    %1754 = vperm.xlu0 %1753, %v1663
    %v1755 = vpop.permute.xlu0 %1754
    %1758 = vset.pattern.permute.xlu0 0
    %1759 = vperm.xlu0 %1758, %v1664
    %v1760 = vpop.permute.xlu0 %1759
    %1763 = vset.pattern.permute.xlu0 0
    %1764 = vperm.xlu0 %1763, %v1665
    %v1765 = vpop.permute.xlu0 %1764
    %1768 = vset.pattern.permute.xlu0 0
    %1769 = vperm.xlu0 %1768, %v1666
    %v1770 = vpop.permute.xlu0 %1769
    %1773 = vset.pattern.permute.xlu0 0
    %1774 = vperm.xlu0 %1773, %v1667
    %v1775 = vpop.permute.xlu0 %1774
    %1778 = vset.pattern.permute.xlu0 0
    %1779 = vperm.xlu0 %1778, %v1668
    %v1780 = vpop.permute.xlu0 %1779
    %1783 = vset.pattern.permute.xlu0 0
    %1784 = vperm.xlu0 %1783, %v1669
    %v1785 = vpop.permute.xlu0 %1784
    %1788 = vset.pattern.permute.xlu0 0
    %1789 = vperm.xlu0 %1788, %v1670
    %v1790 = vpop.permute.xlu0 %1789
    %1793 = vset.pattern.permute.xlu0 0
    %1794 = vperm.xlu0 %1793, %v1671
    %v1795 = vpop.permute.xlu0 %1794
    %1798 = vset.pattern.permute.xlu0 0
    %1799 = vperm.xlu0 %1798, %v1672
    %v1800 = vpop.permute.xlu0 %1799
    %1803 = vset.pattern.permute.xlu0 0
    %1804 = vperm.xlu0 %1803, %v1673
    %v1805 = vpop.permute.xlu0 %1804
    %1808 = vset.pattern.permute.xlu0 0
    %1809 = vperm.xlu0 %1808, %v1674
    %v1810 = vpop.permute.xlu0 %1809
    %1813 = vset.pattern.permute.xlu0 0
    %1814 = vperm.xlu0 %1813, %v1675
    %v1815 = vpop.permute.xlu0 %1814
    %1818 = vset.pattern.permute.xlu0 0
    %1819 = vperm.xlu0 %1818, %v1676
    %v1820 = vpop.permute.xlu0 %1819
    %1823 = vset.pattern.permute.xlu0 0
    %1824 = vperm.xlu0 %1823, %v1677
    %v1825 = vpop.permute.xlu0 %1824
    %1828 = vset.pattern.permute.xlu0 0
    %1829 = vperm.xlu0 %1828, %v1678
    %v1830 = vpop.permute.xlu0 %1829
    %1833 = vset.pattern.permute.xlu0 0
    %1834 = vperm.xlu0 %1833, %v1679
    %v1835 = vpop.permute.xlu0 %1834
    %1838 = vset.pattern.permute.xlu0 0
    %1839 = vperm.xlu0 %1838, %v1680
    %v1840 = vpop.permute.xlu0 %1839
    %v1843 = vlaneseq
    %v1844 = vshrl.u32 %v1843, 7
    %v1845 = vsub.s32 0, %v1844
    %v1846 = vrot.slane %v1681, %v1845
    %v1847 = vlaneseq
    %v1848 = vshrl.u32 %v1847, 7
    %v1849 = vsub.s32 1, %v1848
    %v1850 = vrot.slane %v1681, %v1849
    %vm1853 = vcmp.gt.f32.partialorder %v1685, %v1846
    %vm1854 = vcmp.gt.f32.partialorder %v1685, %v1850
    %vm1855 = vcmp.gt.f32.partialorder %v1690, %v1846
    %vm1856 = vcmp.gt.f32.partialorder %v1690, %v1850
    %vm1857 = vcmp.gt.f32.partialorder %v1695, %v1846
    %vm1858 = vcmp.gt.f32.partialorder %v1695, %v1850
    %vm1859 = vcmp.gt.f32.partialorder %v1700, %v1846
    %vm1860 = vcmp.gt.f32.partialorder %v1700, %v1850
    %vm1861 = vcmp.gt.f32.partialorder %v1705, %v1846
    %vm1862 = vcmp.gt.f32.partialorder %v1705, %v1850
    %vm1863 = vcmp.gt.f32.partialorder %v1710, %v1846
    %vm1864 = vcmp.gt.f32.partialorder %v1710, %v1850
    %vm1865 = vcmp.gt.f32.partialorder %v1715, %v1846
    %vm1866 = vcmp.gt.f32.partialorder %v1715, %v1850
    %vm1867 = vcmp.gt.f32.partialorder %v1720, %v1846
    %vm1868 = vcmp.gt.f32.partialorder %v1720, %v1850
    %vm1869 = vcmp.gt.f32.partialorder %v1725, %v1846
    %vm1870 = vcmp.gt.f32.partialorder %v1725, %v1850
    %vm1871 = vcmp.gt.f32.partialorder %v1730, %v1846
    %vm1872 = vcmp.gt.f32.partialorder %v1730, %v1850
    %vm1873 = vcmp.gt.f32.partialorder %v1735, %v1846
    %vm1874 = vcmp.gt.f32.partialorder %v1735, %v1850
    %vm1875 = vcmp.gt.f32.partialorder %v1740, %v1846
    %vm1876 = vcmp.gt.f32.partialorder %v1740, %v1850
    %vm1877 = vcmp.gt.f32.partialorder %v1745, %v1846
    %vm1878 = vcmp.gt.f32.partialorder %v1745, %v1850
    %vm1879 = vcmp.gt.f32.partialorder %v1750, %v1846
    %vm1880 = vcmp.gt.f32.partialorder %v1750, %v1850
    %vm1881 = vcmp.gt.f32.partialorder %v1755, %v1846
    %vm1882 = vcmp.gt.f32.partialorder %v1755, %v1850
    %vm1883 = vcmp.gt.f32.partialorder %v1760, %v1846
    %vm1884 = vcmp.gt.f32.partialorder %v1760, %v1850
    %vm1885 = vcmp.gt.f32.partialorder %v1765, %v1846
    %vm1886 = vcmp.gt.f32.partialorder %v1765, %v1850
    %vm1887 = vcmp.gt.f32.partialorder %v1770, %v1846
    %vm1888 = vcmp.gt.f32.partialorder %v1770, %v1850
    %vm1889 = vcmp.gt.f32.partialorder %v1775, %v1846
    %vm1890 = vcmp.gt.f32.partialorder %v1775, %v1850
    %vm1891 = vcmp.gt.f32.partialorder %v1780, %v1846
    %vm1892 = vcmp.gt.f32.partialorder %v1780, %v1850
    %vm1893 = vcmp.gt.f32.partialorder %v1785, %v1846
    %vm1894 = vcmp.gt.f32.partialorder %v1785, %v1850
    %vm1895 = vcmp.gt.f32.partialorder %v1790, %v1846
    %vm1896 = vcmp.gt.f32.partialorder %v1790, %v1850
    %vm1897 = vcmp.gt.f32.partialorder %v1795, %v1846
    %vm1898 = vcmp.gt.f32.partialorder %v1795, %v1850
    %vm1899 = vcmp.gt.f32.partialorder %v1800, %v1846
    %vm1900 = vcmp.gt.f32.partialorder %v1800, %v1850
    %vm1901 = vcmp.gt.f32.partialorder %v1805, %v1846
    %vm1902 = vcmp.gt.f32.partialorder %v1805, %v1850
    %vm1903 = vcmp.gt.f32.partialorder %v1810, %v1846
    %vm1904 = vcmp.gt.f32.partialorder %v1810, %v1850
    %vm1905 = vcmp.gt.f32.partialorder %v1815, %v1846
    %vm1906 = vcmp.gt.f32.partialorder %v1815, %v1850
    %vm1907 = vcmp.gt.f32.partialorder %v1820, %v1846
    %vm1908 = vcmp.gt.f32.partialorder %v1820, %v1850
    %vm1909 = vcmp.gt.f32.partialorder %v1825, %v1846
    %vm1910 = vcmp.gt.f32.partialorder %v1825, %v1850
    %vm1911 = vcmp.gt.f32.partialorder %v1830, %v1846
    %vm1912 = vcmp.gt.f32.partialorder %v1830, %v1850
    %vm1913 = vcmp.gt.f32.partialorder %v1835, %v1846
    %vm1914 = vcmp.gt.f32.partialorder %v1835, %v1850
    %vm1915 = vcmp.gt.f32.partialorder %v1840, %v1846
    %vm1916 = vcmp.gt.f32.partialorder %v1840, %v1850
    %vm1917 = vcmp.eq.f32.partialorder %v1685, %v1846
    %vm1918 = vcmp.eq.f32.partialorder %v1685, %v1850
    %vm1919 = vcmp.eq.f32.partialorder %v1690, %v1846
    %vm1920 = vcmp.eq.f32.partialorder %v1690, %v1850
    %vm1921 = vcmp.eq.f32.partialorder %v1695, %v1846
    %vm1922 = vcmp.eq.f32.partialorder %v1695, %v1850
    %vm1923 = vcmp.eq.f32.partialorder %v1700, %v1846
    %vm1924 = vcmp.eq.f32.partialorder %v1700, %v1850
    %vm1925 = vcmp.eq.f32.partialorder %v1705, %v1846
    %vm1926 = vcmp.eq.f32.partialorder %v1705, %v1850
    %vm1927 = vcmp.eq.f32.partialorder %v1710, %v1846
    %vm1928 = vcmp.eq.f32.partialorder %v1710, %v1850
    %vm1929 = vcmp.eq.f32.partialorder %v1715, %v1846
    %vm1930 = vcmp.eq.f32.partialorder %v1715, %v1850
    %vm1931 = vcmp.eq.f32.partialorder %v1720, %v1846
    %vm1932 = vcmp.eq.f32.partialorder %v1720, %v1850
    %vm1933 = vcmp.eq.f32.partialorder %v1725, %v1846
    %vm1934 = vcmp.eq.f32.partialorder %v1725, %v1850
    %vm1935 = vcmp.eq.f32.partialorder %v1730, %v1846
    %vm1936 = vcmp.eq.f32.partialorder %v1730, %v1850
    %vm1937 = vcmp.eq.f32.partialorder %v1735, %v1846
    %vm1938 = vcmp.eq.f32.partialorder %v1735, %v1850
    %vm1939 = vcmp.eq.f32.partialorder %v1740, %v1846
    %vm1940 = vcmp.eq.f32.partialorder %v1740, %v1850
    %vm1941 = vcmp.eq.f32.partialorder %v1745, %v1846
    %vm1942 = vcmp.eq.f32.partialorder %v1745, %v1850
    %vm1943 = vcmp.eq.f32.partialorder %v1750, %v1846
    %vm1944 = vcmp.eq.f32.partialorder %v1750, %v1850
    %vm1945 = vcmp.eq.f32.partialorder %v1755, %v1846
    %vm1946 = vcmp.eq.f32.partialorder %v1755, %v1850
    %vm1947 = vcmp.eq.f32.partialorder %v1760, %v1846
    %vm1948 = vcmp.eq.f32.partialorder %v1760, %v1850
    %vm1949 = vcmp.eq.f32.partialorder %v1765, %v1846
    %vm1950 = vcmp.eq.f32.partialorder %v1765, %v1850
    %vm1951 = vcmp.eq.f32.partialorder %v1770, %v1846
    %vm1952 = vcmp.eq.f32.partialorder %v1770, %v1850
    %vm1953 = vcmp.eq.f32.partialorder %v1775, %v1846
    %vm1954 = vcmp.eq.f32.partialorder %v1775, %v1850
    %vm1955 = vcmp.eq.f32.partialorder %v1780, %v1846
    %vm1956 = vcmp.eq.f32.partialorder %v1780, %v1850
    %vm1957 = vcmp.eq.f32.partialorder %v1785, %v1846
    %vm1958 = vcmp.eq.f32.partialorder %v1785, %v1850
    %vm1959 = vcmp.eq.f32.partialorder %v1790, %v1846
    %vm1960 = vcmp.eq.f32.partialorder %v1790, %v1850
    %vm1961 = vcmp.eq.f32.partialorder %v1795, %v1846
    %vm1962 = vcmp.eq.f32.partialorder %v1795, %v1850
    %vm1963 = vcmp.eq.f32.partialorder %v1800, %v1846
    %vm1964 = vcmp.eq.f32.partialorder %v1800, %v1850
    %vm1965 = vcmp.eq.f32.partialorder %v1805, %v1846
    %vm1966 = vcmp.eq.f32.partialorder %v1805, %v1850
    %vm1967 = vcmp.eq.f32.partialorder %v1810, %v1846
    %vm1968 = vcmp.eq.f32.partialorder %v1810, %v1850
    %vm1969 = vcmp.eq.f32.partialorder %v1815, %v1846
    %vm1970 = vcmp.eq.f32.partialorder %v1815, %v1850
    %vm1971 = vcmp.eq.f32.partialorder %v1820, %v1846
    %vm1972 = vcmp.eq.f32.partialorder %v1820, %v1850
    %vm1973 = vcmp.eq.f32.partialorder %v1825, %v1846
    %vm1974 = vcmp.eq.f32.partialorder %v1825, %v1850
    %vm1975 = vcmp.eq.f32.partialorder %v1830, %v1846
    %vm1976 = vcmp.eq.f32.partialorder %v1830, %v1850
    %vm1977 = vcmp.eq.f32.partialorder %v1835, %v1846
    %vm1978 = vcmp.eq.f32.partialorder %v1835, %v1850
    %vm1979 = vcmp.eq.f32.partialorder %v1840, %v1846
    %vm1980 = vcmp.eq.f32.partialorder %v1840, %v1850
    %vm1981 = vcmp.lt.s32.totalorder %v1611, %v1647
    %vm1982 = vcmp.lt.s32.totalorder %v1611, %v1648
    %vm1983 = vcmp.lt.s32.totalorder %v1612, %v1647
    %vm1984 = vcmp.lt.s32.totalorder %v1612, %v1648
    %vm1985 = vcmp.lt.s32.totalorder %v1613, %v1647
    %vm1986 = vcmp.lt.s32.totalorder %v1613, %v1648
    %vm1987 = vcmp.lt.s32.totalorder %v1614, %v1647
    %vm1988 = vcmp.lt.s32.totalorder %v1614, %v1648
    %vm1989 = vcmp.lt.s32.totalorder %v1615, %v1647
    %vm1990 = vcmp.lt.s32.totalorder %v1615, %v1648
    %vm1991 = vcmp.lt.s32.totalorder %v1616, %v1647
    %vm1992 = vcmp.lt.s32.totalorder %v1616, %v1648
    %vm1993 = vcmp.lt.s32.totalorder %v1617, %v1647
    %vm1994 = vcmp.lt.s32.totalorder %v1617, %v1648
    %vm1995 = vcmp.lt.s32.totalorder %v1618, %v1647
    %vm1996 = vcmp.lt.s32.totalorder %v1618, %v1648
    %vm1997 = vcmp.lt.s32.totalorder %v1619, %v1647
    %vm1998 = vcmp.lt.s32.totalorder %v1619, %v1648
    %vm1999 = vcmp.lt.s32.totalorder %v1620, %v1647
    %vm2000 = vcmp.lt.s32.totalorder %v1620, %v1648
    %vm2001 = vcmp.lt.s32.totalorder %v1621, %v1647
    %vm2002 = vcmp.lt.s32.totalorder %v1621, %v1648
    %vm2003 = vcmp.lt.s32.totalorder %v1622, %v1647
    %vm2004 = vcmp.lt.s32.totalorder %v1622, %v1648
    %vm2005 = vcmp.lt.s32.totalorder %v1623, %v1647
    %vm2006 = vcmp.lt.s32.totalorder %v1623, %v1648
    %vm2007 = vcmp.lt.s32.totalorder %v1624, %v1647
    %vm2008 = vcmp.lt.s32.totalorder %v1624, %v1648
    %vm2009 = vcmp.lt.s32.totalorder %v1625, %v1647
    %vm2010 = vcmp.lt.s32.totalorder %v1625, %v1648
    %vm2011 = vcmp.lt.s32.totalorder %v1626, %v1647
    %vm2012 = vcmp.lt.s32.totalorder %v1626, %v1648
    %vm2013 = vcmp.lt.s32.totalorder %v1627, %v1647
    %vm2014 = vcmp.lt.s32.totalorder %v1627, %v1648
    %vm2015 = vcmp.lt.s32.totalorder %v1628, %v1647
    %vm2016 = vcmp.lt.s32.totalorder %v1628, %v1648
    %vm2017 = vcmp.lt.s32.totalorder %v1629, %v1647
    %vm2018 = vcmp.lt.s32.totalorder %v1629, %v1648
    %vm2019 = vcmp.lt.s32.totalorder %v1630, %v1647
    %vm2020 = vcmp.lt.s32.totalorder %v1630, %v1648
    %vm2021 = vcmp.lt.s32.totalorder %v1631, %v1647
    %vm2022 = vcmp.lt.s32.totalorder %v1631, %v1648
    %vm2023 = vcmp.lt.s32.totalorder %v1632, %v1647
    %vm2024 = vcmp.lt.s32.totalorder %v1632, %v1648
    %vm2025 = vcmp.lt.s32.totalorder %v1633, %v1647
    %vm2026 = vcmp.lt.s32.totalorder %v1633, %v1648
    %vm2027 = vcmp.lt.s32.totalorder %v1634, %v1647
    %vm2028 = vcmp.lt.s32.totalorder %v1634, %v1648
    %vm2029 = vcmp.lt.s32.totalorder %v1635, %v1647
    %vm2030 = vcmp.lt.s32.totalorder %v1635, %v1648
    %vm2031 = vcmp.lt.s32.totalorder %v1636, %v1647
    %vm2032 = vcmp.lt.s32.totalorder %v1636, %v1648
    %vm2033 = vcmp.lt.s32.totalorder %v1637, %v1647
    %vm2034 = vcmp.lt.s32.totalorder %v1637, %v1648
    %vm2035 = vcmp.lt.s32.totalorder %v1638, %v1647
    %vm2036 = vcmp.lt.s32.totalorder %v1638, %v1648
    %vm2037 = vcmp.lt.s32.totalorder %v1639, %v1647
    %vm2038 = vcmp.lt.s32.totalorder %v1639, %v1648
    %vm2039 = vcmp.lt.s32.totalorder %v1640, %v1647
    %vm2040 = vcmp.lt.s32.totalorder %v1640, %v1648
    %vm2041 = vcmp.lt.s32.totalorder %v1641, %v1647
    %vm2042 = vcmp.lt.s32.totalorder %v1641, %v1648
    %vm2043 = vcmp.lt.s32.totalorder %v1642, %v1647
    %vm2044 = vcmp.lt.s32.totalorder %v1642, %v1648
    %vm2045 = vmand %vm1917, %vm1981
    %vm2046 = vmand %vm1918, %vm1982
    %vm2047 = vmand %vm1919, %vm1983
    %vm2048 = vmand %vm1920, %vm1984
    %vm2049 = vmand %vm1921, %vm1985
    %vm2050 = vmand %vm1922, %vm1986
    %vm2051 = vmand %vm1923, %vm1987
    %vm2052 = vmand %vm1924, %vm1988
    %vm2053 = vmand %vm1925, %vm1989
    %vm2054 = vmand %vm1926, %vm1990
    %vm2055 = vmand %vm1927, %vm1991
    %vm2056 = vmand %vm1928, %vm1992
    %vm2057 = vmand %vm1929, %vm1993
    %vm2058 = vmand %vm1930, %vm1994
    %vm2059 = vmand %vm1931, %vm1995
    %vm2060 = vmand %vm1932, %vm1996
    %vm2061 = vmand %vm1933, %vm1997
    %vm2062 = vmand %vm1934, %vm1998
    %vm2063 = vmand %vm1935, %vm1999
    %vm2064 = vmand %vm1936, %vm2000
    %vm2065 = vmand %vm1937, %vm2001
    %vm2066 = vmand %vm1938, %vm2002
    %vm2067 = vmand %vm1939, %vm2003
    %vm2068 = vmand %vm1940, %vm2004
    %vm2069 = vmand %vm1941, %vm2005
    %vm2070 = vmand %vm1942, %vm2006
    %vm2071 = vmand %vm1943, %vm2007
    %vm2072 = vmand %vm1944, %vm2008
    %vm2073 = vmand %vm1945, %vm2009
    %vm2074 = vmand %vm1946, %vm2010
    %vm2075 = vmand %vm1947, %vm2011
    %vm2076 = vmand %vm1948, %vm2012
    %vm2077 = vmand %vm1949, %vm2013
    %vm2078 = vmand %vm1950, %vm2014
    %vm2079 = vmand %vm1951, %vm2015
    %vm2080 = vmand %vm1952, %vm2016
    %vm2081 = vmand %vm1953, %vm2017
    %vm2082 = vmand %vm1954, %vm2018
    %vm2083 = vmand %vm1955, %vm2019
    %vm2084 = vmand %vm1956, %vm2020
    %vm2085 = vmand %vm1957, %vm2021
    %vm2086 = vmand %vm1958, %vm2022
    %vm2087 = vmand %vm1959, %vm2023
    %vm2088 = vmand %vm1960, %vm2024
    %vm2089 = vmand %vm1961, %vm2025
    %vm2090 = vmand %vm1962, %vm2026
    %vm2091 = vmand %vm1963, %vm2027
    %vm2092 = vmand %vm1964, %vm2028
    %vm2093 = vmand %vm1965, %vm2029
    %vm2094 = vmand %vm1966, %vm2030
    %vm2095 = vmand %vm1967, %vm2031
    %vm2096 = vmand %vm1968, %vm2032
    %vm2097 = vmand %vm1969, %vm2033
    %vm2098 = vmand %vm1970, %vm2034
    %vm2099 = vmand %vm1971, %vm2035
    %vm2100 = vmand %vm1972, %vm2036
    %vm2101 = vmand %vm1973, %vm2037
    %vm2102 = vmand %vm1974, %vm2038
    %vm2103 = vmand %vm1975, %vm2039
    %vm2104 = vmand %vm1976, %vm2040
    %vm2105 = vmand %vm1977, %vm2041
    %vm2106 = vmand %vm1978, %vm2042
    %vm2107 = vmand %vm1979, %vm2043
    %vm2108 = vmand %vm1980, %vm2044
    %vm2109 = vmor %vm1853, %vm2045
    %vm2110 = vmor %vm1854, %vm2046
    %vm2111 = vmor %vm1855, %vm2047
    %vm2112 = vmor %vm1856, %vm2048
    %vm2113 = vmor %vm1857, %vm2049
    %vm2114 = vmor %vm1858, %vm2050
    %vm2115 = vmor %vm1859, %vm2051
    %vm2116 = vmor %vm1860, %vm2052
    %vm2117 = vmor %vm1861, %vm2053
    %vm2118 = vmor %vm1862, %vm2054
    %vm2119 = vmor %vm1863, %vm2055
    %vm2120 = vmor %vm1864, %vm2056
    %vm2121 = vmor %vm1865, %vm2057
    %vm2122 = vmor %vm1866, %vm2058
    %vm2123 = vmor %vm1867, %vm2059
    %vm2124 = vmor %vm1868, %vm2060
    %vm2125 = vmor %vm1869, %vm2061
    %vm2126 = vmor %vm1870, %vm2062
    %vm2127 = vmor %vm1871, %vm2063
    %vm2128 = vmor %vm1872, %vm2064
    %vm2129 = vmor %vm1873, %vm2065
    %vm2130 = vmor %vm1874, %vm2066
    %vm2131 = vmor %vm1875, %vm2067
    %vm2132 = vmor %vm1876, %vm2068
    %vm2133 = vmor %vm1877, %vm2069
    %vm2134 = vmor %vm1878, %vm2070
    %vm2135 = vmor %vm1879, %vm2071
    %vm2136 = vmor %vm1880, %vm2072
    %vm2137 = vmor %vm1881, %vm2073
    %vm2138 = vmor %vm1882, %vm2074
    %vm2139 = vmor %vm1883, %vm2075
    %vm2140 = vmor %vm1884, %vm2076
    %vm2141 = vmor %vm1885, %vm2077
    %vm2142 = vmor %vm1886, %vm2078
    %vm2143 = vmor %vm1887, %vm2079
    %vm2144 = vmor %vm1888, %vm2080
    %vm2145 = vmor %vm1889, %vm2081
    %vm2146 = vmor %vm1890, %vm2082
    %vm2147 = vmor %vm1891, %vm2083
    %vm2148 = vmor %vm1892, %vm2084
    %vm2149 = vmor %vm1893, %vm2085
    %vm2150 = vmor %vm1894, %vm2086
    %vm2151 = vmor %vm1895, %vm2087
    %vm2152 = vmor %vm1896, %vm2088
    %vm2153 = vmor %vm1897, %vm2089
    %vm2154 = vmor %vm1898, %vm2090
    %vm2155 = vmor %vm1899, %vm2091
    %vm2156 = vmor %vm1900, %vm2092
    %vm2157 = vmor %vm1901, %vm2093
    %vm2158 = vmor %vm1902, %vm2094
    %vm2159 = vmor %vm1903, %vm2095
    %vm2160 = vmor %vm1904, %vm2096
    %vm2161 = vmor %vm1905, %vm2097
    %vm2162 = vmor %vm1906, %vm2098
    %vm2163 = vmor %vm1907, %vm2099
    %vm2164 = vmor %vm1908, %vm2100
    %vm2165 = vmor %vm1909, %vm2101
    %vm2166 = vmor %vm1910, %vm2102
    %vm2167 = vmor %vm1911, %vm2103
    %vm2168 = vmor %vm1912, %vm2104
    %vm2169 = vmor %vm1913, %vm2105
    %vm2170 = vmor %vm1914, %vm2106
    %vm2171 = vmor %vm1915, %vm2107
    %vm2172 = vmor %vm1916, %vm2108
    %v2173 = vld [vmem:[%s4] sm:$0xff]
    %v2174 = vld [vmem:[%s4 + $0x8] sm:$0xff]
    %v2175 = vld [vmem:[%s4 + $0x10] sm:$0xff]
    %v2176 = vld [vmem:[%s4 + $0x18] sm:$0xff]
    %v2177 = vld [vmem:[%s4 + $0x20] sm:$0xff]
    %v2178 = vld [vmem:[%s4 + $0x28] sm:$0xff]
    %v2179 = vld [vmem:[%s4 + $0x30] sm:$0xff]
    %v2180 = vld [vmem:[%s4 + $0x38] sm:$0xff]
    %v2181 = vld [vmem:[%s4 + $0x40] sm:$0xff]
    %v2182 = vld [vmem:[%s4 + $0x48] sm:$0xff]
    %v2183 = vld [vmem:[%s4 + $0x50] sm:$0xff]
    %v2184 = vld [vmem:[%s4 + $0x58] sm:$0xff]
    %v2185 = vld [vmem:[%s4 + $0x60] sm:$0xff]
    %v2186 = vld [vmem:[%s4 + $0x68] sm:$0xff]
    %v2187 = vld [vmem:[%s4 + $0x70] sm:$0xff]
    %v2188 = vld [vmem:[%s4 + $0x78] sm:$0xff]
    %v2189 = vld [vmem:[%s4 + $0x80] sm:$0xff]
    %v2190 = vld [vmem:[%s4 + $0x88] sm:$0xff]
    %v2191 = vld [vmem:[%s4 + $0x90] sm:$0xff]
    %v2192 = vld [vmem:[%s4 + $0x98] sm:$0xff]
    %v2193 = vld [vmem:[%s4 + $0xa0] sm:$0xff]
    %v2194 = vld [vmem:[%s4 + $0xa8] sm:$0xff]
    %v2195 = vld [vmem:[%s4 + $0xb0] sm:$0xff]
    %v2196 = vld [vmem:[%s4 + $0xb8] sm:$0xff]
    %v2197 = vld [vmem:[%s4 + $0xc0] sm:$0xff]
    %v2198 = vld [vmem:[%s4 + $0xc8] sm:$0xff]
    %v2199 = vld [vmem:[%s4 + $0xd0] sm:$0xff]
    %v2200 = vld [vmem:[%s4 + $0xd8] sm:$0xff]
    %v2201 = vld [vmem:[%s4 + $0xe0] sm:$0xff]
    %v2202 = vld [vmem:[%s4 + $0xe8] sm:$0xff]
    %v2203 = vld [vmem:[%s4 + $0xf0] sm:$0xff]
    %v2204 = vld [vmem:[%s4 + $0xf8] sm:$0xff]
    %v2205 = vld [vmem:[%s2] sm:$0x3]
    %2206 = vset.pattern.permute.xlu0 0
    %2207 = vperm.xlu0 %2206, %v2173
    %v2208 = vpop.permute.xlu0 %2207
    %2209 = vset.pattern.permute.xlu0 0
    %2210 = vperm.xlu0 %2209, %v2174
    %v2211 = vpop.permute.xlu0 %2210
    %2212 = vset.pattern.permute.xlu0 0
    %2213 = vperm.xlu0 %2212, %v2175
    %v2214 = vpop.permute.xlu0 %2213
    %2215 = vset.pattern.permute.xlu0 0
    %2216 = vperm.xlu0 %2215, %v2176
    %v2217 = vpop.permute.xlu0 %2216
    %2218 = vset.pattern.permute.xlu0 0
    %2219 = vperm.xlu0 %2218, %v2177
    %v2220 = vpop.permute.xlu0 %2219
    %2221 = vset.pattern.permute.xlu0 0
    %2222 = vperm.xlu0 %2221, %v2178
    %v2223 = vpop.permute.xlu0 %2222
    %2224 = vset.pattern.permute.xlu0 0
    %2225 = vperm.xlu0 %2224, %v2179
    %v2226 = vpop.permute.xlu0 %2225
    %2227 = vset.pattern.permute.xlu0 0
    %2228 = vperm.xlu0 %2227, %v2180
    %v2229 = vpop.permute.xlu0 %2228
    %2230 = vset.pattern.permute.xlu0 0
    %2231 = vperm.xlu0 %2230, %v2181
    %v2232 = vpop.permute.xlu0 %2231
    %2233 = vset.pattern.permute.xlu0 0
    %2234 = vperm.xlu0 %2233, %v2182
    %v2235 = vpop.permute.xlu0 %2234
    %2236 = vset.pattern.permute.xlu0 0
    %2237 = vperm.xlu0 %2236, %v2183
    %v2238 = vpop.permute.xlu0 %2237
    %2239 = vset.pattern.permute.xlu0 0
    %2240 = vperm.xlu0 %2239, %v2184
    %v2241 = vpop.permute.xlu0 %2240
    %2242 = vset.pattern.permute.xlu0 0
    %2243 = vperm.xlu0 %2242, %v2185
    %v2244 = vpop.permute.xlu0 %2243
    %2245 = vset.pattern.permute.xlu0 0
    %2246 = vperm.xlu0 %2245, %v2186
    %v2247 = vpop.permute.xlu0 %2246
    %2248 = vset.pattern.permute.xlu0 0
    %2249 = vperm.xlu0 %2248, %v2187
    %v2250 = vpop.permute.xlu0 %2249
    %2251 = vset.pattern.permute.xlu0 0
    %2252 = vperm.xlu0 %2251, %v2188
    %v2253 = vpop.permute.xlu0 %2252
    %2254 = vset.pattern.permute.xlu0 0
    %2255 = vperm.xlu0 %2254, %v2189
    %v2256 = vpop.permute.xlu0 %2255
    %2257 = vset.pattern.permute.xlu0 0
    %2258 = vperm.xlu0 %2257, %v2190
    %v2259 = vpop.permute.xlu0 %2258
    %2260 = vset.pattern.permute.xlu0 0
    %2261 = vperm.xlu0 %2260, %v2191
    %v2262 = vpop.permute.xlu0 %2261
    %2263 = vset.pattern.permute.xlu0 0
    %2264 = vperm.xlu0 %2263, %v2192
    %v2265 = vpop.permute.xlu0 %2264
    %2266 = vset.pattern.permute.xlu0 0
    %2267 = vperm.xlu0 %2266, %v2193
    %v2268 = vpop.permute.xlu0 %2267
    %2269 = vset.pattern.permute.xlu0 0
    %2270 = vperm.xlu0 %2269, %v2194
    %v2271 = vpop.permute.xlu0 %2270
    %2272 = vset.pattern.permute.xlu0 0
    %2273 = vperm.xlu0 %2272, %v2195
    %v2274 = vpop.permute.xlu0 %2273
    %2275 = vset.pattern.permute.xlu0 0
    %2276 = vperm.xlu0 %2275, %v2196
    %v2277 = vpop.permute.xlu0 %2276
    %2278 = vset.pattern.permute.xlu0 0
    %2279 = vperm.xlu0 %2278, %v2197
    %v2280 = vpop.permute.xlu0 %2279
    %2281 = vset.pattern.permute.xlu0 0
    %2282 = vperm.xlu0 %2281, %v2198
    %v2283 = vpop.permute.xlu0 %2282
    %2284 = vset.pattern.permute.xlu0 0
    %2285 = vperm.xlu0 %2284, %v2199
    %v2286 = vpop.permute.xlu0 %2285
    %2287 = vset.pattern.permute.xlu0 0
    %2288 = vperm.xlu0 %2287, %v2200
    %v2289 = vpop.permute.xlu0 %2288
    %2290 = vset.pattern.permute.xlu0 0
    %2291 = vperm.xlu0 %2290, %v2201
    %v2292 = vpop.permute.xlu0 %2291
    %2293 = vset.pattern.permute.xlu0 0
    %2294 = vperm.xlu0 %2293, %v2202
    %v2295 = vpop.permute.xlu0 %2294
    %2296 = vset.pattern.permute.xlu0 0
    %2297 = vperm.xlu0 %2296, %v2203
    %v2298 = vpop.permute.xlu0 %2297
    %2299 = vset.pattern.permute.xlu0 0
    %2300 = vperm.xlu0 %2299, %v2204
    %v2301 = vpop.permute.xlu0 %2300
    %v2302 = vlaneseq
    %v2303 = vshrl.u32 %v2302, 7
    %v2304 = vsub.s32 0, %v2303
    %v2305 = vrot.slane %v2205, %v2304
    %v2306 = vlaneseq
    %v2307 = vshrl.u32 %v2306, 7
    %v2308 = vsub.s32 1, %v2307
    %v2309 = vrot.slane %v2205, %v2308
    %vm2310 = vcmp.eq.s32.totalorder %v2208, %v2305
    %vm2311 = vcmp.eq.s32.totalorder %v2208, %v2309
    %vm2312 = vcmp.eq.s32.totalorder %v2211, %v2305
    %vm2313 = vcmp.eq.s32.totalorder %v2211, %v2309
    %vm2314 = vcmp.eq.s32.totalorder %v2214, %v2305
    %vm2315 = vcmp.eq.s32.totalorder %v2214, %v2309
    %vm2316 = vcmp.eq.s32.totalorder %v2217, %v2305
    %vm2317 = vcmp.eq.s32.totalorder %v2217, %v2309
    %vm2318 = vcmp.eq.s32.totalorder %v2220, %v2305
    %vm2319 = vcmp.eq.s32.totalorder %v2220, %v2309
    %vm2320 = vcmp.eq.s32.totalorder %v2223, %v2305
    %vm2321 = vcmp.eq.s32.totalorder %v2223, %v2309
    %vm2322 = vcmp.eq.s32.totalorder %v2226, %v2305
    %vm2323 = vcmp.eq.s32.totalorder %v2226, %v2309
    %vm2324 = vcmp.eq.s32.totalorder %v2229, %v2305
    %vm2325 = vcmp.eq.s32.totalorder %v2229, %v2309
    %vm2326 = vcmp.eq.s32.totalorder %v2232, %v2305
    %vm2327 = vcmp.eq.s32.totalorder %v2232, %v2309
    %vm2328 = vcmp.eq.s32.totalorder %v2235, %v2305
    %vm2329 = vcmp.eq.s32.totalorder %v2235, %v2309
    %vm2330 = vcmp.eq.s32.totalorder %v2238, %v2305
    %vm2331 = vcmp.eq.s32.totalorder %v2238, %v2309
    %vm2332 = vcmp.eq.s32.totalorder %v2241, %v2305
    %vm2333 = vcmp.eq.s32.totalorder %v2241, %v2309
    %vm2334 = vcmp.eq.s32.totalorder %v2244, %v2305
    %vm2335 = vcmp.eq.s32.totalorder %v2244, %v2309
    %vm2336 = vcmp.eq.s32.totalorder %v2247, %v2305
    %vm2337 = vcmp.eq.s32.totalorder %v2247, %v2309
    %vm2338 = vcmp.eq.s32.totalorder %v2250, %v2305
    %vm2339 = vcmp.eq.s32.totalorder %v2250, %v2309
    %vm2340 = vcmp.eq.s32.totalorder %v2253, %v2305
    %vm2341 = vcmp.eq.s32.totalorder %v2253, %v2309
    %vm2342 = vcmp.eq.s32.totalorder %v2256, %v2305
    %vm2343 = vcmp.eq.s32.totalorder %v2256, %v2309
    %vm2344 = vcmp.eq.s32.totalorder %v2259, %v2305
    %vm2345 = vcmp.eq.s32.totalorder %v2259, %v2309
    %vm2346 = vcmp.eq.s32.totalorder %v2262, %v2305
    %vm2347 = vcmp.eq.s32.totalorder %v2262, %v2309
    %vm2348 = vcmp.eq.s32.totalorder %v2265, %v2305
    %vm2349 = vcmp.eq.s32.totalorder %v2265, %v2309
    %vm2350 = vcmp.eq.s32.totalorder %v2268, %v2305
    %vm2351 = vcmp.eq.s32.totalorder %v2268, %v2309
    %vm2352 = vcmp.eq.s32.totalorder %v2271, %v2305
    %vm2353 = vcmp.eq.s32.totalorder %v2271, %v2309
    %vm2354 = vcmp.eq.s32.totalorder %v2274, %v2305
    %vm2355 = vcmp.eq.s32.totalorder %v2274, %v2309
    %vm2356 = vcmp.eq.s32.totalorder %v2277, %v2305
    %vm2357 = vcmp.eq.s32.totalorder %v2277, %v2309
    %vm2358 = vcmp.eq.s32.totalorder %v2280, %v2305
    %vm2359 = vcmp.eq.s32.totalorder %v2280, %v2309
    %vm2360 = vcmp.eq.s32.totalorder %v2283, %v2305
    %vm2361 = vcmp.eq.s32.totalorder %v2283, %v2309
    %vm2362 = vcmp.eq.s32.totalorder %v2286, %v2305
    %vm2363 = vcmp.eq.s32.totalorder %v2286, %v2309
    %vm2364 = vcmp.eq.s32.totalorder %v2289, %v2305
    %vm2365 = vcmp.eq.s32.totalorder %v2289, %v2309
    %vm2366 = vcmp.eq.s32.totalorder %v2292, %v2305
    %vm2367 = vcmp.eq.s32.totalorder %v2292, %v2309
    %vm2368 = vcmp.eq.s32.totalorder %v2295, %v2305
    %vm2369 = vcmp.eq.s32.totalorder %v2295, %v2309
    %vm2370 = vcmp.eq.s32.totalorder %v2298, %v2305
    %vm2371 = vcmp.eq.s32.totalorder %v2298, %v2309
    %vm2372 = vcmp.eq.s32.totalorder %v2301, %v2305
    %vm2373 = vcmp.eq.s32.totalorder %v2301, %v2309
    %vm2374 = vmand %vm2310, %vm2109
    %vm2375 = vmand %vm2311, %vm2110
    %vm2376 = vmand %vm2312, %vm2111
    %vm2377 = vmand %vm2313, %vm2112
    %vm2378 = vmand %vm2314, %vm2113
    %vm2379 = vmand %vm2315, %vm2114
    %vm2380 = vmand %vm2316, %vm2115
    %vm2381 = vmand %vm2317, %vm2116
    %vm2382 = vmand %vm2318, %vm2117
    %vm2383 = vmand %vm2319, %vm2118
    %vm2384 = vmand %vm2320, %vm2119
    %vm2385 = vmand %vm2321, %vm2120
    %vm2386 = vmand %vm2322, %vm2121
    %vm2387 = vmand %vm2323, %vm2122
    %vm2388 = vmand %vm2324, %vm2123
    %vm2389 = vmand %vm2325, %vm2124
    %vm2390 = vmand %vm2326, %vm2125
    %vm2391 = vmand %vm2327, %vm2126
    %vm2392 = vmand %vm2328, %vm2127
    %vm2393 = vmand %vm2329, %vm2128
    %vm2394 = vmand %vm2330, %vm2129
    %vm2395 = vmand %vm2331, %vm2130
    %vm2396 = vmand %vm2332, %vm2131
    %vm2397 = vmand %vm2333, %vm2132
    %vm2398 = vmand %vm2334, %vm2133
    %vm2399 = vmand %vm2335, %vm2134
    %vm2400 = vmand %vm2336, %vm2135
    %vm2401 = vmand %vm2337, %vm2136
    %vm2402 = vmand %vm2338, %vm2137
    %vm2403 = vmand %vm2339, %vm2138
    %vm2404 = vmand %vm2340, %vm2139
    %vm2405 = vmand %vm2341, %vm2140
    %vm2406 = vmand %vm2342, %vm2141
    %vm2407 = vmand %vm2343, %vm2142
    %vm2408 = vmand %vm2344, %vm2143
    %vm2409 = vmand %vm2345, %vm2144
    %vm2410 = vmand %vm2346, %vm2145
    %vm2411 = vmand %vm2347, %vm2146
    %vm2412 = vmand %vm2348, %vm2147
    %vm2413 = vmand %vm2349, %vm2148
    %vm2414 = vmand %vm2350, %vm2149
    %vm2415 = vmand %vm2351, %vm2150
    %vm2416 = vmand %vm2352, %vm2151
    %vm2417 = vmand %vm2353, %vm2152
    %vm2418 = vmand %vm2354, %vm2153
    %vm2419 = vmand %vm2355, %vm2154
    %vm2420 = vmand %vm2356, %vm2155
    %vm2421 = vmand %vm2357, %vm2156
    %vm2422 = vmand %vm2358, %vm2157
    %vm2423 = vmand %vm2359, %vm2158
    %vm2424 = vmand %vm2360, %vm2159
    %vm2425 = vmand %vm2361, %vm2160
    %vm2426 = vmand %vm2362, %vm2161
    %vm2427 = vmand %vm2363, %vm2162
    %vm2428 = vmand %vm2364, %vm2163
    %vm2429 = vmand %vm2365, %vm2164
    %vm2430 = vmand %vm2366, %vm2165
    %vm2431 = vmand %vm2367, %vm2166
    %vm2432 = vmand %vm2368, %vm2167
    %vm2433 = vmand %vm2369, %vm2168
    %vm2434 = vmand %vm2370, %vm2169
    %vm2435 = vmand %vm2371, %vm2170
    %vm2436 = vmand %vm2372, %vm2171
    %vm2437 = vmand %vm2373, %vm2172
    %v2438 = vsel %vm2374, 1, 0
    %v2439 = vsel %vm2375, 1, 0
    %v2440 = vsel %vm2376, 1, 0
    %v2441 = vsel %vm2377, 1, 0
    %v2442 = vsel %vm2378, 1, 0
    %v2443 = vsel %vm2379, 1, 0
    %v2444 = vsel %vm2380, 1, 0
    %v2445 = vsel %vm2381, 1, 0
    %v2446 = vsel %vm2382, 1, 0
    %v2447 = vsel %vm2383, 1, 0
    %v2448 = vsel %vm2384, 1, 0
    %v2449 = vsel %vm2385, 1, 0
    %v2450 = vsel %vm2386, 1, 0
    %v2451 = vsel %vm2387, 1, 0
    %v2452 = vsel %vm2388, 1, 0
    %v2453 = vsel %vm2389, 1, 0
    %v2454 = vsel %vm2390, 1, 0
    %v2455 = vsel %vm2391, 1, 0
    %v2456 = vsel %vm2392, 1, 0
    %v2457 = vsel %vm2393, 1, 0
    %v2458 = vsel %vm2394, 1, 0
    %v2459 = vsel %vm2395, 1, 0
    %v2460 = vsel %vm2396, 1, 0
    %v2461 = vsel %vm2397, 1, 0
    %v2462 = vsel %vm2398, 1, 0
    %v2463 = vsel %vm2399, 1, 0
    %v2464 = vsel %vm2400, 1, 0
    %v2465 = vsel %vm2401, 1, 0
    %v2466 = vsel %vm2402, 1, 0
    %v2467 = vsel %vm2403, 1, 0
    %v2468 = vsel %vm2404, 1, 0
    %v2469 = vsel %vm2405, 1, 0
    %v2470 = vsel %vm2406, 1, 0
    %v2471 = vsel %vm2407, 1, 0
    %v2472 = vsel %vm2408, 1, 0
    %v2473 = vsel %vm2409, 1, 0
    %v2474 = vsel %vm2410, 1, 0
    %v2475 = vsel %vm2411, 1, 0
    %v2476 = vsel %vm2412, 1, 0
    %v2477 = vsel %vm2413, 1, 0
    %v2478 = vsel %vm2414, 1, 0
    %v2479 = vsel %vm2415, 1, 0
    %v2480 = vsel %vm2416, 1, 0
    %v2481 = vsel %vm2417, 1, 0
    %v2482 = vsel %vm2418, 1, 0
    %v2483 = vsel %vm2419, 1, 0
    %v2484 = vsel %vm2420, 1, 0
    %v2485 = vsel %vm2421, 1, 0
    %v2486 = vsel %vm2422, 1, 0
    %v2487 = vsel %vm2423, 1, 0
    %v2488 = vsel %vm2424, 1, 0
    %v2489 = vsel %vm2425, 1, 0
    %v2490 = vsel %vm2426, 1, 0
    %v2491 = vsel %vm2427, 1, 0
    %v2492 = vsel %vm2428, 1, 0
    %v2493 = vsel %vm2429, 1, 0
    %v2494 = vsel %vm2430, 1, 0
    %v2495 = vsel %vm2431, 1, 0
    %v2496 = vsel %vm2432, 1, 0
    %v2497 = vsel %vm2433, 1, 0
    %v2498 = vsel %vm2434, 1, 0
    %v2499 = vsel %vm2435, 1, 0
    %v2500 = vsel %vm2436, 1, 0
    %v2501 = vsel %vm2437, 1, 0
    %v2502 = vcvt.s32.f32 %v2438
    %v2503 = vcvt.s32.f32 %v2439
    %v2504 = vcvt.s32.f32 %v2440
    %v2505 = vcvt.s32.f32 %v2441
    %v2506 = vcvt.s32.f32 %v2442
    %v2507 = vcvt.s32.f32 %v2443
    %v2508 = vcvt.s32.f32 %v2444
    %v2509 = vcvt.s32.f32 %v2445
    %v2510 = vcvt.s32.f32 %v2446
    %v2511 = vcvt.s32.f32 %v2447
    %v2512 = vcvt.s32.f32 %v2448
    %v2513 = vcvt.s32.f32 %v2449
    %v2514 = vcvt.s32.f32 %v2450
    %v2515 = vcvt.s32.f32 %v2451
    %v2516 = vcvt.s32.f32 %v2452
    %v2517 = vcvt.s32.f32 %v2453
    %v2518 = vcvt.s32.f32 %v2454
    %v2519 = vcvt.s32.f32 %v2455
    %v2520 = vcvt.s32.f32 %v2456
    %v2521 = vcvt.s32.f32 %v2457
    %v2522 = vcvt.s32.f32 %v2458
    %v2523 = vcvt.s32.f32 %v2459
    %v2524 = vcvt.s32.f32 %v2460
    %v2525 = vcvt.s32.f32 %v2461
    %v2526 = vcvt.s32.f32 %v2462
    %v2527 = vcvt.s32.f32 %v2463
    %v2528 = vcvt.s32.f32 %v2464
    %v2529 = vcvt.s32.f32 %v2465
    %v2530 = vcvt.s32.f32 %v2466
    %v2531 = vcvt.s32.f32 %v2467
    %v2532 = vcvt.s32.f32 %v2468
    %v2533 = vcvt.s32.f32 %v2469
    %v2534 = vcvt.s32.f32 %v2470
    %v2535 = vcvt.s32.f32 %v2471
    %v2536 = vcvt.s32.f32 %v2472
    %v2537 = vcvt.s32.f32 %v2473
    %v2538 = vcvt.s32.f32 %v2474
    %v2539 = vcvt.s32.f32 %v2475
    %v2540 = vcvt.s32.f32 %v2476
    %v2541 = vcvt.s32.f32 %v2477
    %v2542 = vcvt.s32.f32 %v2478
    %v2543 = vcvt.s32.f32 %v2479
    %v2544 = vcvt.s32.f32 %v2480
    %v2545 = vcvt.s32.f32 %v2481
    %v2546 = vcvt.s32.f32 %v2482
    %v2547 = vcvt.s32.f32 %v2483
    %v2548 = vcvt.s32.f32 %v2484
    %v2549 = vcvt.s32.f32 %v2485
    %v2550 = vcvt.s32.f32 %v2486
    %v2551 = vcvt.s32.f32 %v2487
    %v2552 = vcvt.s32.f32 %v2488
    %v2553 = vcvt.s32.f32 %v2489
    %v2554 = vcvt.s32.f32 %v2490
    %v2555 = vcvt.s32.f32 %v2491
    %v2556 = vcvt.s32.f32 %v2492
    %v2557 = vcvt.s32.f32 %v2493
    %v2558 = vcvt.s32.f32 %v2494
    %v2559 = vcvt.s32.f32 %v2495
    %v2560 = vcvt.s32.f32 %v2496
    %v2561 = vcvt.s32.f32 %v2497
    %v2562 = vcvt.s32.f32 %v2498
    %v2563 = vcvt.s32.f32 %v2499
    %v2564 = vcvt.s32.f32 %v2500
    %v2565 = vcvt.s32.f32 %v2501
    %v2566 = vpack.c.bf16 %v2504, %v2502
    %v2567 = vpack.c.bf16 %v2505, %v2503
    %v2568 = vpack.c.bf16 %v2508, %v2506
    %v2569 = vpack.c.bf16 %v2509, %v2507
    %v2570 = vpack.c.bf16 %v2512, %v2510
    %v2571 = vpack.c.bf16 %v2513, %v2511
    %v2572 = vpack.c.bf16 %v2516, %v2514
    %v2573 = vpack.c.bf16 %v2517, %v2515
    %v2574 = vpack.c.bf16 %v2520, %v2518
    %v2575 = vpack.c.bf16 %v2521, %v2519
    %v2576 = vpack.c.bf16 %v2524, %v2522
    %v2577 = vpack.c.bf16 %v2525, %v2523
    %v2578 = vpack.c.bf16 %v2528, %v2526
    %v2579 = vpack.c.bf16 %v2529, %v2527
    %v2580 = vpack.c.bf16 %v2532, %v2530
    %v2581 = vpack.c.bf16 %v2533, %v2531
    %v2582 = vpack.c.bf16 %v2536, %v2534
    %v2583 = vpack.c.bf16 %v2537, %v2535
    %v2584 = vpack.c.bf16 %v2540, %v2538
    %v2585 = vpack.c.bf16 %v2541, %v2539
    %v2586 = vpack.c.bf16 %v2544, %v2542
    %v2587 = vpack.c.bf16 %v2545, %v2543
    %v2588 = vpack.c.bf16 %v2548, %v2546
    %v2589 = vpack.c.bf16 %v2549, %v2547
    %v2590 = vpack.c.bf16 %v2552, %v2550
    %v2591 = vpack.c.bf16 %v2553, %v2551
    %v2592 = vpack.c.bf16 %v2556, %v2554
    %v2593 = vpack.c.bf16 %v2557, %v2555
    %v2594 = vpack.c.bf16 %v2560, %v2558
    %v2595 = vpack.c.bf16 %v2561, %v2559
    %v2596 = vpack.c.bf16 %v2564, %v2562
    %v2597 = vpack.c.bf16 %v2565, %v2563
    %v2598 = vld [vmem:[#allocation2] sm:$0x3]
    %2599 = vmatprep.subr.bf16.mxu0 %v2567
    %2600 = vmatpush1.bf16.msra.mxu0 %v2566
    %2601 = vmatprep.subr.bf16.mxu0 %v2569
    %2602 = vmatpush1.bf16.msra.mxu0 %v2568
    %2603 = vmatprep.subr.bf16.mxu0 %v2571
    %2604 = vmatpush1.bf16.msra.mxu0 %v2570
    %2605 = vmatprep.subr.bf16.mxu0 %v2573
    %2606 = vmatpush1.bf16.msra.mxu0 %v2572
    %2607 = vmatprep.subr.bf16.mxu0 %v2575
    %2608 = vmatpush1.bf16.msra.mxu0 %v2574
    %2609 = vmatprep.subr.bf16.mxu0 %v2577
    %2610 = vmatpush1.bf16.msra.mxu0 %v2576
    %2611 = vmatprep.subr.bf16.mxu0 %v2579
    %2612 = vmatpush1.bf16.msra.mxu0 %v2578
    %2613 = vmatprep.subr.bf16.mxu0 %v2581
    %2614 = vmatpush1.bf16.msra.mxu0 %v2580
    %2615 = vmatprep.subr.bf16.mxu0 %v2583
    %2616 = vmatpush1.bf16.msra.mxu0 %v2582
    %2617 = vmatprep.subr.bf16.mxu0 %v2585
    %2618 = vmatpush1.bf16.msra.mxu0 %v2584
    %2619 = vmatprep.subr.bf16.mxu0 %v2587
    %2620 = vmatpush1.bf16.msra.mxu0 %v2586
    %2621 = vmatprep.subr.bf16.mxu0 %v2589
    %2622 = vmatpush1.bf16.msra.mxu0 %v2588
    %2623 = vmatprep.subr.bf16.mxu0 %v2591
    %2624 = vmatpush1.bf16.msra.mxu0 %v2590
    %2625 = vmatprep.subr.bf16.mxu0 %v2593
    %2626 = vmatpush1.bf16.msra.mxu0 %v2592
    %2627 = vmatprep.subr.bf16.mxu0 %v2595
    %2628 = vmatpush1.bf16.msra.mxu0 %v2594
    %2629 = vmatprep.subr.bf16.mxu0 %v2597
    %2630 = vmatpush1.bf16.msra.mxu0 %v2596
    %2631 = vmatprep.mubr.bf16.mxu0 1065369472
    %2632 = vmatmul.mubr.bf16.gmra.mrb[0].mxu0 1065369472
    %v2633 = vpop.f32.mrb[0].mxu0
    %v2634 = vadd.f32 0.0, %v2633
    %v2635 = vpop.f32.mrb[0].mxu0
    %v2636 = vadd.f32 0.0, %v2635
    %v2637 = vpop.f32.mrb[0].mxu0
    %v2638 = vpop.f32.mrb[0].mxu0
    %2639 = vdwg.mxu0
    %v2642 = vcombine.low %v2634, %v2636
    %v2644 = vunpack.c.l.s4 1966171168
    %v2645 = vunpack.c.0.s8 %v2644
    %v2646 = vlaneseq
    %v2647 = vshrl.u32 %v2646, 7
    %v2648 = vsub.s32 %v2645, %v2647
    %v2649 = vrot.slane %v2642, %v2648
    %v2651 = vunpack.c.l.s4 1966171168
    %v2652 = vunpack.c.0.s8 %v2651
    %v2653 = vlaneseq
    %v2654 = vshrl.u32 %v2653, 7
    %v2655 = vsub.s32 %v2652, %v2654
    %v2656 = vrot.slane %v2649, %v2655
    %v2658 = vadd.f32 %v2598, %v2656
    %v2659 = vlaneseq
    %vm2660 = vcmp.ge.s32.totalorder %v2659, 0
    %vm2661 = vcmp.lt.s32.totalorder %v2659, 256
    %vm2662 = vmand %vm2660, %vm2661
    %2663 = vst.msk [vmem:[#allocation2] sm:$0x3] %vm2662, %v2658
  $region33: #{_pipeline.1} parent=0 // pred_fallthru
    _
  // Predicated region
  $region34: #{_pipeline.1} parent=0 // pred_check
    %p2664 = pneg %p22
  $region35: #{_pipeline.1} parent=0 // pred_check_branch
    %2666 = sbr.rel (%p2664) target = $region37
  $region36: #{_pipeline.1} parent=0 // pred_region
    %v2667 = vld [vmem:[#allocation2] sm:$0x3]
    %vm2668 = vcmp.eq.f32.partialorder %v2667, 0.0
    %v2669 = vsel %vm2668, 1, 0
    %v2670 = vlaneseq
    %vm2671 = vcmp.ge.s32.totalorder %v2670, 0
    %vm2672 = vcmp.lt.s32.totalorder %v2670, 256
    %vm2673 = vmand %vm2671, %vm2672
    %2674 = vst.msk [vmem:[%s6] sm:$0x3] %vm2673, %v2669
  $region37: #{_pipeline.1} parent=0 // pred_fallthru
    _
  // Predicated region
  $region38: #{_pipeline.1} parent=0 // pred_check
    _
  $region39: #{_pipeline.1} parent=0 // pred_check_branch
    %2676 = sbr.rel (0) target = $region41
  $region40: #{_pipeline.1} parent=0 // pred_region
    _
  $region41: #{_pipeline.1} parent=0 // pred_fallthru
    _
  // Predicated region
  $region42: #{_pipeline.1} parent=0 // pred_check
    _
  $region43: #{_pipeline.1} parent=0 // pred_check_branch
    %2678 = sbr.rel (0) target = $region45
  $region44: #{_pipeline.1} parent=0 // pred_region
    _
  $region45: #{_pipeline.1} parent=0 // pred_fallthru
    _

</llo_original>
